<compile_context>
chip_gen: v7x
topology: tpu7x:2x2x1
jax: 0.10.0
libtpu: 0.0.40
codegen_flags: <defaults>
</compile_context>

<pallas_src>
import functools

import jax
import jax.numpy as jnp
from jax.experimental import pallas as pl
from jax.experimental.pallas import tpu as pltpu


def _round_up(x, m):
    return (x + m - 1) // m * m


def _fast_recip(x):
    # EUP approximate reciprocal + one Newton step: keeps the divide off the VALU
    # while staying ~f32-exact.
    r = pl.reciprocal(x, approx=True)
    return r * (2.0 - x * r)


def decoder_gru_kernel(emb_ref, h0_ref, enc_ref,
                       wih_ref, whh_ref, bx_ref, bhn_ref,
                       wc1_ref, wc2_ref, bc_ref, wo_ref, bo_ref,
                       out_ref, hid_ref, *, valid_t):
    n_layers = h0_ref.shape[0]
    Hp = h0_ref.shape[2]
    x = emb_ref[...].astype(jnp.float32)                      # (Bp, Hp)

    # ---- stacked GRU cell (seq_len == 1, dropout == 0) -------------------
    # Two fused (Bp, Hp) @ (Hp, 3Hp) matmuls per layer; gates r|z|n are
    # lane-aligned 128-multiple blocks of the fused result.
    for l in range(n_layers):
        h_prev = h0_ref[l].astype(jnp.float32)                # (Bp, Hp)
        gx = jnp.dot(x, wih_ref[l], preferred_element_type=jnp.float32) + bx_ref[l]
        gh = jnp.dot(h_prev, whh_ref[l], preferred_element_type=jnp.float32)
        r = jax.nn.sigmoid(gx[:, 0:Hp] + gh[:, 0:Hp])
        z = jax.nn.sigmoid(gx[:, Hp:2 * Hp] + gh[:, Hp:2 * Hp])
        n = jnp.tanh(gx[:, 2 * Hp:3 * Hp] + r * (gh[:, 2 * Hp:3 * Hp] + bhn_ref[l]))
        h_new = (1.0 - z) * n + z * h_prev
        hid_ref[l] = h_new.astype(hid_ref.dtype)
        x = h_new                                             # feeds next layer

    gru_out = x                                               # (Bp, Hp)

    # ---- LuongAttn 'dot' score + softmax over T (MXU contractions) -------
    enc = enc_ref[...].astype(jnp.float32)                    # (Bp, Tp, Hp)
    q = gru_out[:, None, :]                                   # (Bp, 1, Hp)
    # score[b, 0, t] = sum_h q[b,0,h] * enc[b,t,h]  (batched dot on the MXU)
    score = jnp.einsum('bqh,bth->bqt', q, enc,
                       preferred_element_type=jnp.float32)    # (Bp, 1, Tp)
    if valid_t != score.shape[2]:
        t_idx = jax.lax.broadcasted_iota(jnp.int32, score.shape, 2)
        score = jnp.where(t_idx < valid_t, score, -1e30)
    m = jnp.max(score, axis=2, keepdims=True)
    e = jnp.exp(score - m)
    attn_w = e * _fast_recip(jnp.sum(e, axis=2, keepdims=True))   # (Bp, 1, Tp)

    # context[b, h] = sum_t attn_w[b,0,t] * enc[b,t,h]
    context = jnp.einsum('bqt,bth->bqh', attn_w, enc,
                         preferred_element_type=jnp.float32)[:, 0, :]   # (Bp, Hp)

    # ---- concat Linear + tanh (concat split to avoid lane-dim concat) ----
    concat_out = jnp.tanh(
        jnp.dot(gru_out, wc1_ref[...], preferred_element_type=jnp.float32)
        + jnp.dot(context, wc2_ref[...], preferred_element_type=jnp.float32)
        + bc_ref[...])                                        # (Bp, Hp)

    # ---- output projection + softmax over (padded) vocab ------------------
    # Padded vocab lanes have bias -1e30 -> exp underflows to 0, so the
    # normalization over the padded row equals the unpadded softmax.
    logits = jnp.dot(concat_out, wo_ref[...], preferred_element_type=jnp.float32) + bo_ref[...]
    lm = jnp.max(logits, axis=1, keepdims=True)
    le = jnp.exp(logits - lm)
    out_ref[...] = (le * _fast_recip(jnp.sum(le, axis=1, keepdims=True))).astype(out_ref.dtype)


def init_params(key, vocab_size, hidden_size, output_size, n_layers):
    """Logical (unpadded) parameters, already transposed for x @ W and with the
    GRU gates fused on the output axis (gate order r, z, n like PyTorch)."""
    ks = jax.random.split(key, 9)
    u = lambda k, shape: jax.random.uniform(k, shape, jnp.float32, -0.1, 0.1)
    H, L, O = hidden_size, n_layers, output_size
    # PyTorch layout: weight_ih_l{k} (3H_out, H_in), gate order (r, z, n).
    wih_pt = u(ks[0], (L, 3, H, H))       # [l, gate, out, in]
    whh_pt = u(ks[1], (L, 3, H, H))
    bih_pt = u(ks[2], (L, 3, H))
    bhh_pt = u(ks[3], (L, 3, H))
    wc_pt = u(ks[4], (H, 2 * H))          # concat Linear weight (out, 2H_in)
    bc = u(ks[5], (1, H))
    wo_pt = u(ks[6], (O, H))
    bo = u(ks[7], (1, O))
    emb = u(ks[8], (vocab_size, H))
    # Fused x@W layouts: (L, H_in, 3*H_out), columns [g*H:(g+1)*H] = gate g.
    wih = jnp.transpose(wih_pt, (0, 3, 1, 2)).reshape(L, H, 3 * H)
    whh = jnp.transpose(whh_pt, (0, 3, 1, 2)).reshape(L, H, 3 * H)
    bih = bih_pt.reshape(L, 1, 3 * H)
    bhh = bhh_pt.reshape(L, 1, 3 * H)
    return dict(
        embedding=emb,
        wih=wih, whh=whh, bih=bih, bhh=bhh,
        wc1=wc_pt[:, :H].T,               # (H, H) for gru_out
        wc2=wc_pt[:, H:].T,               # (H, H) for context
        bc=bc,
        wo=wo_pt.T,                       # (H, O)
        bo=bo,
    )


def prepare_kernel_params(params):
    """One-time padding of the weights to vreg-aligned shapes (lanes -> x128)."""
    L, H, _ = params["wih"].shape
    O = params["wo"].shape[1]
    Hp = _round_up(H, 128)
    Op = _round_up(O, 128)

    def pad2(x, rows, cols):
        return jnp.pad(x, ((0, rows - x.shape[0]), (0, cols - x.shape[1])))

    def pad_gates_w(w):           # (L, H, 3H) -> (L, Hp, 3Hp), per-gate padding
        w = w.reshape(L, H, 3, H)
        w = jnp.pad(w, ((0, 0), (0, Hp - H), (0, 0), (0, Hp - H)))
        return w.reshape(L, Hp, 3 * Hp)

    def pad_gates_b(b):           # (L, 1, 3H) -> (L, 1, 3Hp)
        b = b.reshape(L, 1, 3, H)
        b = jnp.pad(b, ((0, 0), (0, 0), (0, 0), (0, Hp - H)))
        return b.reshape(L, 1, 3 * Hp)

    # Fold bhh (r, z) into bih at prep time; keep bhh (n) separate so it lands
    # inside the r* term in the kernel.  One fewer full-width bias add per layer.
    bih, bhh = params["bih"], params["bhh"]
    bhh_rz = jnp.concatenate([bhh[..., :2 * H], jnp.zeros_like(bhh[..., 2 * H:])], axis=-1)
    bx = bih + bhh_rz                                          # (L, 1, 3H)
    bhn = bhh[..., 2 * H:]                                     # (L, 1, H)

    return dict(
        embedding=jnp.pad(params["embedding"], ((0, 0), (0, Hp - H))),   # (V, Hp)
        wih=pad_gates_w(params["wih"]), whh=pad_gates_w(params["whh"]),
        bx=pad_gates_b(bx),
        bhn=jnp.pad(bhn, ((0, 0), (0, 0), (0, Hp - H))),
        wc1=pad2(params["wc1"], Hp, Hp), wc2=pad2(params["wc2"], Hp, Hp),
        bc=pad2(params["bc"], 1, Hp),
        wo=pad2(params["wo"], Hp, Op),
        # Padded vocab lanes get a huge negative bias -> vanish under softmax.
        bo=jnp.pad(params["bo"], ((0, 0), (0, Op - O)), constant_values=-1e30),
    )


@functools.partial(jax.jit, static_argnames=("output_size",))
def decoder_gru_forward(kparams, input_seq, last_hidden, encoder_outputs, *, output_size):
    L, B, H = last_hidden.shape
    T = encoder_outputs.shape[0]
    Hp = kparams["wc1"].shape[0]
    Op = kparams["wo"].shape[1]
    Bp = _round_up(max(B, 1), 8)
    Tp = _round_up(max(T, 1), 8)
    O = output_size

    # embedding lookup + dropout(p=0) == identity (JAX glue outside the kernel).
    embedded = kparams["embedding"][input_seq[0]]                      # (B, Hp)
    emb_p = jnp.pad(embedded, ((0, Bp - B), (0, 0)))                   # (Bp, Hp)
    h0_p = jnp.pad(last_hidden, ((0, 0), (0, Bp - B), (0, Hp - H)))    # (L, Bp, Hp)
    enc_p = jnp.pad(jnp.transpose(encoder_outputs, (1, 0, 2)),
                    ((0, Bp - B), (0, Tp - T), (0, Hp - H)))           # (Bp, Tp, Hp)

    inputs = (emb_p, h0_p, enc_p,
              kparams["wih"], kparams["whh"], kparams["bx"], kparams["bhn"],
              kparams["wc1"], kparams["wc2"], kparams["bc"],
              kparams["wo"], kparams["bo"])

    in_bytes = sum(a.size * a.dtype.itemsize for a in inputs)
    out_bytes = (Bp * Op + L * Bp * Hp) * 4
    vmem_limit = int(min(max(2 * (in_bytes + out_bytes) + (2 << 20), 16 << 20), 64 << 20))

    flops = (12 * L * Bp * Hp * Hp        # fused GRU gate matmuls
             + 4 * Bp * Tp * Hp           # attention score + context
             + 4 * Bp * Hp * Hp           # concat linear (two halves)
             + 2 * Bp * Hp * Op)          # output projection
    transcendentals = 3 * L * Bp * Hp + Bp * Tp + Bp * Hp + Bp * Op
    bytes_accessed = in_bytes + out_bytes

    vmem = pl.BlockSpec(memory_space=pltpu.MemorySpace.VMEM)
    out_p, hidden_p = pl.pallas_call(
        functools.partial(decoder_gru_kernel, valid_t=T),
        out_shape=(jax.ShapeDtypeStruct((Bp, Op), jnp.float32),
                   jax.ShapeDtypeStruct((L, Bp, Hp), jnp.float32)),
        in_specs=[vmem] * 12,
        out_specs=(vmem, vmem),
        input_output_aliases={1: 1},    # write the new hidden state in place of h0
        compiler_params=pltpu.CompilerParams(vmem_limit_bytes=vmem_limit),
        cost_estimate=pl.CostEstimate(flops=flops,
                                      transcendentals=transcendentals,
                                      bytes_accessed=bytes_accessed),
    )(*inputs)

    return out_p[:B, :O], hidden_p[:, :B, :H]


def decoder_gru_reference(params, input_seq, last_hidden, encoder_outputs):
    """Pure-JAX reference mirroring the PyTorch module (attn_model='dot')."""
    H = last_hidden.shape[2]
    x = params["embedding"][input_seq[0]]
    new_hidden = []
    for l in range(last_hidden.shape[0]):
        h = last_hidden[l]
        gx = x @ params["wih"][l] + params["bih"][l]
        gh = h @ params["whh"][l] + params["bhh"][l]
        r = jax.nn.sigmoid(gx[:, :H] + gh[:, :H])
        z = jax.nn.sigmoid(gx[:, H:2 * H] + gh[:, H:2 * H])
        n = jnp.tanh(gx[:, 2 * H:] + r * gh[:, 2 * H:])
        x = (1.0 - z) * n + z * h
        new_hidden.append(x)
    gru_out = x
    score = jnp.sum(gru_out[None] * encoder_outputs, axis=2)        # (T, B)
    attn_w = jax.nn.softmax(score.T, axis=1)                        # (B, T)
    context = jnp.einsum("bt,tbh->bh", attn_w, encoder_outputs)
    concat_out = jnp.tanh(gru_out @ params["wc1"] + context @ params["wc2"] + params["bc"])
    logits = concat_out @ params["wo"] + params["bo"]
    return jax.nn.softmax(logits, axis=1), jnp.stack(new_hidden, axis=0)


if __name__ == "__main__":
    B, H, T, L, VOCAB = 2, 32, 8, 2, 48   # batch, hidden, enc seq len, layers, output/vocab size
    key = jax.random.PRNGKey(0)
    k_p, k_seq, k_h, k_enc = jax.random.split(key, 4)

    params = init_params(k_p, VOCAB, H, VOCAB, L)
    kparams = prepare_kernel_params(params)            # pad weights once

    input_seq = jax.random.randint(k_seq, (1, B), 0, VOCAB, dtype=jnp.int32)
    last_hidden = jax.random.normal(k_h, (L, B, H), jnp.float32)
    encoder_outputs = jax.random.normal(k_enc, (T, B, H), jnp.float32)

    out, hidden = decoder_gru_forward(kparams, input_seq, last_hidden, encoder_outputs,
                                      output_size=VOCAB)
    jax.block_until_ready((out, hidden))

    ref_out, ref_hidden = decoder_gru_reference(params, input_seq, last_hidden, encoder_outputs)
    assert out.shape == (B, VOCAB) and hidden.shape == (L, B, H)
    assert jnp.allclose(hidden, ref_hidden, atol=1e-4, rtol=1e-4)
    assert jnp.allclose(out, ref_out, atol=5e-4, rtol=5e-4)
    assert jnp.allclose(jnp.sum(out, axis=1), 1.0, atol=1e-4)

    print("KERNEL_OK")
</pallas_src>

<mosaic_0001>
module attributes {stable_mosaic.version = 11 : i64} {
  func.func @decoder_gru_kernel(%arg0: memref<8x128xf32, #tpu.memory_space<vmem>>, %arg1: memref<2x8x128xf32, #tpu.memory_space<vmem>>, %arg2: memref<8x8x128xf32, #tpu.memory_space<vmem>>, %arg3: memref<2x128x384xf32, #tpu.memory_space<vmem>>, %arg4: memref<2x128x384xf32, #tpu.memory_space<vmem>>, %arg5: memref<2x1x384xf32, #tpu.memory_space<vmem>>, %arg6: memref<2x1x128xf32, #tpu.memory_space<vmem>>, %arg7: memref<128x128xf32, #tpu.memory_space<vmem>>, %arg8: memref<128x128xf32, #tpu.memory_space<vmem>>, %arg9: memref<1x128xf32, #tpu.memory_space<vmem>>, %arg10: memref<128x128xf32, #tpu.memory_space<vmem>>, %arg11: memref<1x128xf32, #tpu.memory_space<vmem>>, %arg12: memref<8x128xf32, #tpu.memory_space<vmem>>, %arg13: memref<2x8x128xf32, #tpu.memory_space<vmem>>) attributes {dimension_semantics = [], scalar_prefetch = 0 : i64, scratch_operands = 0 : i64, tpu.core_type = #tpu.core_type<tc>} {
    %c0 = arith.constant 0 : index
    %c0_0 = arith.constant 0 : index
    %0 = vector.load %arg0[%c0, %c0_0] : memref<8x128xf32, #tpu.memory_space<vmem>>, vector<8x128xf32>
    %c0_1 = arith.constant 0 : index
    %c0_2 = arith.constant 0 : index
    %c0_3 = arith.constant 0 : index
    %1 = vector.load %arg1[%c0_1, %c0_2, %c0_3] : memref<2x8x128xf32, #tpu.memory_space<vmem>>, vector<1x8x128xf32>
    %2 = vector.shape_cast %1 : vector<1x8x128xf32> to vector<8x128xf32>
    %c0_4 = arith.constant 0 : index
    %c0_5 = arith.constant 0 : index
    %c0_6 = arith.constant 0 : index
    %3 = vector.load %arg3[%c0_4, %c0_5, %c0_6] : memref<2x128x384xf32, #tpu.memory_space<vmem>>, vector<1x128x384xf32>
    %4 = vector.shape_cast %3 : vector<1x128x384xf32> to vector<128x384xf32>
    %cst = arith.constant dense<0.000000e+00> : vector<8x384xf32>
    %5 = tpu.matmul %0, %4, %cst {dimension_numbers = #tpu.dot_dimension_numbers<[1], [0], [0], [1], [0, 0, 1, 1], [], []>} : vector<8x128xf32>, vector<128x384xf32>, vector<8x384xf32> -> vector<8x384xf32>
    %c0_7 = arith.constant 0 : index
    %c0_8 = arith.constant 0 : index
    %c0_9 = arith.constant 0 : index
    %6 = vector.load %arg5[%c0_7, %c0_8, %c0_9] : memref<2x1x384xf32, #tpu.memory_space<vmem>>, vector<1x1x384xf32>
    %7 = vector.shape_cast %6 : vector<1x1x384xf32> to vector<1x384xf32>
    %8 = vector.broadcast %7 : vector<1x384xf32> to vector<8x384xf32>
    %9 = arith.addf %5, %8 : vector<8x384xf32>
    %c0_10 = arith.constant 0 : index
    %c0_11 = arith.constant 0 : index
    %c0_12 = arith.constant 0 : index
    %10 = vector.load %arg4[%c0_10, %c0_11, %c0_12] : memref<2x128x384xf32, #tpu.memory_space<vmem>>, vector<1x128x384xf32>
    %11 = vector.shape_cast %10 : vector<1x128x384xf32> to vector<128x384xf32>
    %cst_13 = arith.constant dense<0.000000e+00> : vector<8x384xf32>
    %12 = tpu.matmul %2, %11, %cst_13 {dimension_numbers = #tpu.dot_dimension_numbers<[1], [0], [0], [1], [0, 0, 1, 1], [], []>} : vector<8x128xf32>, vector<128x384xf32>, vector<8x384xf32> -> vector<8x384xf32>
    %13 = vector.extract_strided_slice %9 {offsets = [0, 0], sizes = [8, 128], strides = [1, 1]} : vector<8x384xf32> to vector<8x128xf32>
    %14 = vector.extract_strided_slice %12 {offsets = [0, 0], sizes = [8, 128], strides = [1, 1]} : vector<8x384xf32> to vector<8x128xf32>
    %15 = arith.addf %13, %14 : vector<8x128xf32>
    %16 = arith.negf %15 : vector<8x128xf32>
    %17 = math.exp %16 : vector<8x128xf32>
    %cst_14 = arith.constant 1.000000e+00 : f32
    %18 = vector.broadcast %cst_14 : f32 to vector<8x128xf32>
    %19 = arith.addf %18, %17 : vector<8x128xf32>
    %20 = arith.divf %18, %19 : vector<8x128xf32>
    %21 = vector.extract_strided_slice %9 {offsets = [0, 128], sizes = [8, 128], strides = [1, 1]} : vector<8x384xf32> to vector<8x128xf32>
    %22 = vector.extract_strided_slice %12 {offsets = [0, 128], sizes = [8, 128], strides = [1, 1]} : vector<8x384xf32> to vector<8x128xf32>
    %23 = arith.addf %21, %22 : vector<8x128xf32>
    %24 = arith.negf %23 : vector<8x128xf32>
    %25 = math.exp %24 : vector<8x128xf32>
    %cst_15 = arith.constant 1.000000e+00 : f32
    %26 = vector.broadcast %cst_15 : f32 to vector<8x128xf32>
    %27 = arith.addf %26, %25 : vector<8x128xf32>
    %28 = arith.divf %26, %27 : vector<8x128xf32>
    %29 = vector.extract_strided_slice %9 {offsets = [0, 256], sizes = [8, 128], strides = [1, 1]} : vector<8x384xf32> to vector<8x128xf32>
    %30 = vector.extract_strided_slice %12 {offsets = [0, 256], sizes = [8, 128], strides = [1, 1]} : vector<8x384xf32> to vector<8x128xf32>
    %c0_16 = arith.constant 0 : index
    %c0_17 = arith.constant 0 : index
    %c0_18 = arith.constant 0 : index
    %31 = vector.load %arg6[%c0_16, %c0_17, %c0_18] : memref<2x1x128xf32, #tpu.memory_space<vmem>>, vector<1x1x128xf32>
    %32 = vector.shape_cast %31 : vector<1x1x128xf32> to vector<1x128xf32>
    %33 = vector.broadcast %32 : vector<1x128xf32> to vector<8x128xf32>
    %34 = arith.addf %30, %33 : vector<8x128xf32>
    %35 = arith.mulf %20, %34 : vector<8x128xf32>
    %36 = arith.addf %29, %35 : vector<8x128xf32>
    %37 = math.tanh %36 : vector<8x128xf32>
    %cst_19 = arith.constant 1.000000e+00 : f32
    %38 = vector.broadcast %cst_19 : f32 to vector<8x128xf32>
    %39 = arith.subf %38, %28 : vector<8x128xf32>
    %40 = arith.mulf %39, %37 : vector<8x128xf32>
    %41 = arith.mulf %28, %2 : vector<8x128xf32>
    %42 = arith.addf %40, %41 : vector<8x128xf32>
    %c0_20 = arith.constant 0 : index
    %c0_21 = arith.constant 0 : index
    %c0_22 = arith.constant 0 : index
    %43 = vector.load %arg13[%c0_20, %c0_21, %c0_22] : memref<2x8x128xf32, #tpu.memory_space<vmem>>, vector<1x8x128xf32>
    %44 = vector.shape_cast %43 : vector<1x8x128xf32> to vector<8x128xf32>
    %45 = vector.shape_cast %42 : vector<8x128xf32> to vector<1x8x128xf32>
    tpu.vector_store %arg13[%c0_20, %c0_21, %c0_22], %45 {strides = array<i32>} : memref<2x8x128xf32, #tpu.memory_space<vmem>>, vector<1x8x128xf32>,
    %c1 = arith.constant 1 : index
    %c0_23 = arith.constant 0 : index
    %c0_24 = arith.constant 0 : index
    %46 = vector.load %arg1[%c1, %c0_23, %c0_24] : memref<2x8x128xf32, #tpu.memory_space<vmem>>, vector<1x8x128xf32>
    %47 = vector.shape_cast %46 : vector<1x8x128xf32> to vector<8x128xf32>
    %c1_25 = arith.constant 1 : index
    %c0_26 = arith.constant 0 : index
    %c0_27 = arith.constant 0 : index
    %48 = vector.load %arg3[%c1_25, %c0_26, %c0_27] : memref<2x128x384xf32, #tpu.memory_space<vmem>>, vector<1x128x384xf32>
    %49 = vector.shape_cast %48 : vector<1x128x384xf32> to vector<128x384xf32>
    %cst_28 = arith.constant dense<0.000000e+00> : vector<8x384xf32>
    %50 = tpu.matmul %42, %49, %cst_28 {dimension_numbers = #tpu.dot_dimension_numbers<[1], [0], [0], [1], [0, 0, 1, 1], [], []>} : vector<8x128xf32>, vector<128x384xf32>, vector<8x384xf32> -> vector<8x384xf32>
    %c1_29 = arith.constant 1 : index
    %c0_30 = arith.constant 0 : index
    %c0_31 = arith.constant 0 : index
    %51 = vector.load %arg5[%c1_29, %c0_30, %c0_31] : memref<2x1x384xf32, #tpu.memory_space<vmem>>, vector<1x1x384xf32>
    %52 = vector.shape_cast %51 : vector<1x1x384xf32> to vector<1x384xf32>
    %53 = vector.broadcast %52 : vector<1x384xf32> to vector<8x384xf32>
    %54 = arith.addf %50, %53 : vector<8x384xf32>
    %c1_32 = arith.constant 1 : index
    %c0_33 = arith.constant 0 : index
    %c0_34 = arith.constant 0 : index
    %55 = vector.load %arg4[%c1_32, %c0_33, %c0_34] : memref<2x128x384xf32, #tpu.memory_space<vmem>>, vector<1x128x384xf32>
    %56 = vector.shape_cast %55 : vector<1x128x384xf32> to vector<128x384xf32>
    %cst_35 = arith.constant dense<0.000000e+00> : vector<8x384xf32>
    %57 = tpu.matmul %47, %56, %cst_35 {dimension_numbers = #tpu.dot_dimension_numbers<[1], [0], [0], [1], [0, 0, 1, 1], [], []>} : vector<8x128xf32>, vector<128x384xf32>, vector<8x384xf32> -> vector<8x384xf32>
    %58 = vector.extract_strided_slice %54 {offsets = [0, 0], sizes = [8, 128], strides = [1, 1]} : vector<8x384xf32> to vector<8x128xf32>
    %59 = vector.extract_strided_slice %57 {offsets = [0, 0], sizes = [8, 128], strides = [1, 1]} : vector<8x384xf32> to vector<8x128xf32>
    %60 = arith.addf %58, %59 : vector<8x128xf32>
    %61 = arith.negf %60 : vector<8x128xf32>
    %62 = math.exp %61 : vector<8x128xf32>
    %cst_36 = arith.constant 1.000000e+00 : f32
    %63 = vector.broadcast %cst_36 : f32 to vector<8x128xf32>
    %64 = arith.addf %63, %62 : vector<8x128xf32>
    %65 = arith.divf %63, %64 : vector<8x128xf32>
    %66 = vector.extract_strided_slice %54 {offsets = [0, 128], sizes = [8, 128], strides = [1, 1]} : vector<8x384xf32> to vector<8x128xf32>
    %67 = vector.extract_strided_slice %57 {offsets = [0, 128], sizes = [8, 128], strides = [1, 1]} : vector<8x384xf32> to vector<8x128xf32>
    %68 = arith.addf %66, %67 : vector<8x128xf32>
    %69 = arith.negf %68 : vector<8x128xf32>
    %70 = math.exp %69 : vector<8x128xf32>
    %cst_37 = arith.constant 1.000000e+00 : f32
    %71 = vector.broadcast %cst_37 : f32 to vector<8x128xf32>
    %72 = arith.addf %71, %70 : vector<8x128xf32>
    %73 = arith.divf %71, %72 : vector<8x128xf32>
    %74 = vector.extract_strided_slice %54 {offsets = [0, 256], sizes = [8, 128], strides = [1, 1]} : vector<8x384xf32> to vector<8x128xf32>
    %75 = vector.extract_strided_slice %57 {offsets = [0, 256], sizes = [8, 128], strides = [1, 1]} : vector<8x384xf32> to vector<8x128xf32>
    %c1_38 = arith.constant 1 : index
    %c0_39 = arith.constant 0 : index
    %c0_40 = arith.constant 0 : index
    %76 = vector.load %arg6[%c1_38, %c0_39, %c0_40] : memref<2x1x128xf32, #tpu.memory_space<vmem>>, vector<1x1x128xf32>
    %77 = vector.shape_cast %76 : vector<1x1x128xf32> to vector<1x128xf32>
    %78 = vector.broadcast %77 : vector<1x128xf32> to vector<8x128xf32>
    %79 = arith.addf %75, %78 : vector<8x128xf32>
    %80 = arith.mulf %65, %79 : vector<8x128xf32>
    %81 = arith.addf %74, %80 : vector<8x128xf32>
    %82 = math.tanh %81 : vector<8x128xf32>
    %cst_41 = arith.constant 1.000000e+00 : f32
    %83 = vector.broadcast %cst_41 : f32 to vector<8x128xf32>
    %84 = arith.subf %83, %73 : vector<8x128xf32>
    %85 = arith.mulf %84, %82 : vector<8x128xf32>
    %86 = arith.mulf %73, %47 : vector<8x128xf32>
    %87 = arith.addf %85, %86 : vector<8x128xf32>
    %c1_42 = arith.constant 1 : index
    %c0_43 = arith.constant 0 : index
    %c0_44 = arith.constant 0 : index
    %88 = vector.load %arg13[%c1_42, %c0_43, %c0_44] : memref<2x8x128xf32, #tpu.memory_space<vmem>>, vector<1x8x128xf32>
    %89 = vector.shape_cast %88 : vector<1x8x128xf32> to vector<8x128xf32>
    %90 = vector.shape_cast %87 : vector<8x128xf32> to vector<1x8x128xf32>
    tpu.vector_store %arg13[%c1_42, %c0_43, %c0_44], %90 {strides = array<i32>} : memref<2x8x128xf32, #tpu.memory_space<vmem>>, vector<1x8x128xf32>,
    %c0_45 = arith.constant 0 : index
    %c0_46 = arith.constant 0 : index
    %c0_47 = arith.constant 0 : index
    %91 = vector.load %arg2[%c0_45, %c0_46, %c0_47] : memref<8x8x128xf32, #tpu.memory_space<vmem>>, vector<8x8x128xf32>
    %92 = vector.shape_cast %87 : vector<8x128xf32> to vector<8x1x128xf32>
    "tpu.trace_start"() <{level = 10 : i32, message = "bqh,bth->bqt"}> : () -> ()
    %cst_48 = arith.constant dense<0.000000e+00> : vector<8x1x8xf32>
    %93 = tpu.matmul %92, %91, %cst_48 {dimension_numbers = #tpu.dot_dimension_numbers<[2], [2], [1], [1], [0, 0, 0, 1, 1, 1], [0], [0]>} : vector<8x1x128xf32>, vector<8x8x128xf32>, vector<8x1x8xf32> -> vector<8x1x8xf32>
    "tpu.trace_stop"() : () -> ()
    %cst_49 = arith.constant dense<0xFF800000> : vector<8x1xf32>
    %94 = vector.multi_reduction <maximumf>, %93, %cst_49 [2] : vector<8x1x8xf32> to vector<8x1xf32>
    %95 = vector.shape_cast %94 : vector<8x1xf32> to vector<8x1x1xf32>
    %96 = vector.broadcast %95 : vector<8x1x1xf32> to vector<8x1x8xf32>
    %97 = arith.subf %93, %96 : vector<8x1x8xf32>
    %98 = math.exp %97 : vector<8x1x8xf32>
    %cst_50 = arith.constant dense<0.000000e+00> : vector<8x1xf32>
    %99 = vector.multi_reduction <add>, %98, %cst_50 [2] : vector<8x1x8xf32> to vector<8x1xf32>
    %100 = vector.shape_cast %99 : vector<8x1xf32> to vector<8x1x1xf32>
    %101 = tpu.reciprocal %100 {approx = true} : vector<8x1x1xf32> -> vector<8x1x1xf32>
    %102 = arith.mulf %100, %101 : vector<8x1x1xf32>
    %cst_51 = arith.constant 2.000000e+00 : f32
    %103 = vector.broadcast %cst_51 : f32 to vector<8x1x1xf32>
    %104 = arith.subf %103, %102 : vector<8x1x1xf32>
    %105 = arith.mulf %101, %104 : vector<8x1x1xf32>
    %106 = vector.broadcast %105 : vector<8x1x1xf32> to vector<8x1x8xf32>
    %107 = arith.mulf %98, %106 : vector<8x1x8xf32>
    "tpu.trace_start"() <{level = 10 : i32, message = "bqt,bth->bqh"}> : () -> ()
    %cst_52 = arith.constant dense<0.000000e+00> : vector<8x1x128xf32>
    %108 = tpu.matmul %107, %91, %cst_52 {dimension_numbers = #tpu.dot_dimension_numbers<[2], [1], [1], [2], [0, 0, 0, 1, 1, 2], [0], [0]>} : vector<8x1x8xf32>, vector<8x8x128xf32>, vector<8x1x128xf32> -> vector<8x1x128xf32>
    "tpu.trace_stop"() : () -> ()
    %109 = vector.shape_cast %108 : vector<8x1x128xf32> to vector<8x128xf32>
    %c0_53 = arith.constant 0 : index
    %c0_54 = arith.constant 0 : index
    %110 = vector.load %arg7[%c0_53, %c0_54] : memref<128x128xf32, #tpu.memory_space<vmem>>, vector<128x128xf32>
    %cst_55 = arith.constant dense<0.000000e+00> : vector<8x128xf32>
    %111 = tpu.matmul %87, %110, %cst_55 {dimension_numbers = #tpu.dot_dimension_numbers<[1], [0], [0], [1], [0, 0, 1, 1], [], []>} : vector<8x128xf32>, vector<128x128xf32>, vector<8x128xf32> -> vector<8x128xf32>
    %c0_56 = arith.constant 0 : index
    %c0_57 = arith.constant 0 : index
    %112 = vector.load %arg8[%c0_56, %c0_57] : memref<128x128xf32, #tpu.memory_space<vmem>>, vector<128x128xf32>
    %cst_58 = arith.constant dense<0.000000e+00> : vector<8x128xf32>
    %113 = tpu.matmul %109, %112, %cst_58 {dimension_numbers = #tpu.dot_dimension_numbers<[1], [0], [0], [1], [0, 0, 1, 1], [], []>} : vector<8x128xf32>, vector<128x128xf32>, vector<8x128xf32> -> vector<8x128xf32>
    %114 = arith.addf %111, %113 : vector<8x128xf32>
    %c0_59 = arith.constant 0 : index
    %c0_60 = arith.constant 0 : index
    %115 = vector.load %arg9[%c0_59, %c0_60] : memref<1x128xf32, #tpu.memory_space<vmem>>, vector<1x128xf32>
    %116 = vector.broadcast %115 : vector<1x128xf32> to vector<8x128xf32>
    %117 = arith.addf %114, %116 : vector<8x128xf32>
    %118 = math.tanh %117 : vector<8x128xf32>
    %c0_61 = arith.constant 0 : index
    %c0_62 = arith.constant 0 : index
    %119 = vector.load %arg10[%c0_61, %c0_62] : memref<128x128xf32, #tpu.memory_space<vmem>>, vector<128x128xf32>
    %cst_63 = arith.constant dense<0.000000e+00> : vector<8x128xf32>
    %120 = tpu.matmul %118, %119, %cst_63 {dimension_numbers = #tpu.dot_dimension_numbers<[1], [0], [0], [1], [0, 0, 1, 1], [], []>} : vector<8x128xf32>, vector<128x128xf32>, vector<8x128xf32> -> vector<8x128xf32>
    %c0_64 = arith.constant 0 : index
    %c0_65 = arith.constant 0 : index
    %121 = vector.load %arg11[%c0_64, %c0_65] : memref<1x128xf32, #tpu.memory_space<vmem>>, vector<1x128xf32>
    %122 = vector.broadcast %121 : vector<1x128xf32> to vector<8x128xf32>
    %123 = arith.addf %120, %122 : vector<8x128xf32>
    %cst_66 = arith.constant dense<0xFF800000> : vector<8xf32>
    %124 = vector.multi_reduction <maximumf>, %123, %cst_66 [1] : vector<8x128xf32> to vector<8xf32>
    %125 = vector.shape_cast %124 : vector<8xf32> to vector<8x1xf32>
    %126 = vector.broadcast %125 : vector<8x1xf32> to vector<8x128xf32>
    %127 = arith.subf %123, %126 : vector<8x128xf32>
    %128 = math.exp %127 : vector<8x128xf32>
    %cst_67 = arith.constant dense<0.000000e+00> : vector<8xf32>
    %129 = vector.multi_reduction <add>, %128, %cst_67 [1] : vector<8x128xf32> to vector<8xf32>
    %130 = vector.shape_cast %129 : vector<8xf32> to vector<8x1xf32>
    %131 = tpu.reciprocal %130 {approx = true} : vector<8x1xf32> -> vector<8x1xf32>
    %132 = arith.mulf %130, %131 : vector<8x1xf32>
    %cst_68 = arith.constant 2.000000e+00 : f32
    %133 = vector.broadcast %cst_68 : f32 to vector<8x1xf32>
    %134 = arith.subf %133, %132 : vector<8x1xf32>
    %135 = arith.mulf %131, %134 : vector<8x1xf32>
    %136 = vector.broadcast %135 : vector<8x1xf32> to vector<8x128xf32>
    %137 = arith.mulf %128, %136 : vector<8x128xf32>
    %c0_69 = arith.constant 0 : index
    %c0_70 = arith.constant 0 : index
    %138 = vector.load %arg12[%c0_69, %c0_70] : memref<8x128xf32, #tpu.memory_space<vmem>>, vector<8x128xf32>
    tpu.vector_store %arg12[%c0_69, %c0_70], %137 {strides = array<i32>} : memref<8x128xf32, #tpu.memory_space<vmem>>, vector<8x128xf32>,
    return
  }
}

</mosaic_0001>

<llo_original>
// kernel: decoder_gru_forward.1
$region0: #{decoder_gru_forward.1}
  #allocation0 [shape = 'u32[]', space=smem, size = 0x4, offset = 0x4, fixed_abs, tag = 'smem constant byte address 0x4 - core index']
  #allocation1 [shape = 'u32[144,128]{1,0:T(1,128)}', space=vmem, size = 0x12000, scoped, tag = 'internal scratch']
  %s0 = inlined_call_operand.vmem [shape: f32[8,128], index: 0, kind: input, shape index: {}]
  %s1 = inlined_call_operand.vmem [shape: f32[2,8,128], index: 1, kind: input, shape index: {}, may-alias: {1,13}]
  %s2 = inlined_call_operand.vmem [shape: f32[8,8,128], index: 2, kind: input, shape index: {}]
  %s3 = inlined_call_operand.hbm [shape: f32[2,128,384], index: 3, kind: input, shape index: {}]
  %s4 = inlined_call_operand.hbm [shape: f32[2,128,384], index: 4, kind: input, shape index: {}]
  %s5 = inlined_call_operand.vmem [shape: f32[2,1,384], index: 5, kind: input, shape index: {}]
  %s6 = inlined_call_operand.vmem [shape: f32[2,1,128], index: 6, kind: input, shape index: {}]
  %s7 = inlined_call_operand.vmem [shape: f32[128,128], index: 7, kind: input, shape index: {}]
  %s8 = inlined_call_operand.hbm [shape: f32[128,128], index: 8, kind: input, shape index: {}]
  %s9 = inlined_call_operand.vmem [shape: f32[1,128], index: 9, kind: input, shape index: {}]
  %s10 = inlined_call_operand.hbm [shape: f32[128,128], index: 10, kind: input, shape index: {}]
  %s11 = inlined_call_operand.vmem [shape: f32[1,128], index: 11, kind: input, shape index: {}]
  %s12 = inlined_call_operand.vmem [shape: f32[8,128], index: 12, kind: output, shape index: {0}]
  %s13 = inlined_call_operand.vmem [shape: f32[2,8,128], index: 13, kind: output, shape index: {1}, may-alias: {1,13}]
  %14 = xla_tuple %s12, %s13
  %s15 = sld [smem:[#allocation0]]
  $region82: #{decoder_gru_forward.1} parent=0
    _
  %s17 = ssub.s32 1, %s15
  %s18 = scalar_select 0, %s17, %s15
  $region1: #{decoder_gru_forward.1} parent=0
    #allocation2 [shape = 'u8[393216]{0}', space=vmem, size = 0x60000, scoped, tag = 'input window, operand 3, single buffered']
    #allocation3 [shape = 's32[1]{0}', space=sflag, size = 0x4, scoped, tag = 'scoped memory for decoder_gru_forward.1']
    #allocation4 [shape = 'u8[393216]{0}', space=vmem, size = 0x60000, scoped, tag = 'input window, operand 4, single buffered']
    #allocation5 [shape = 's32[1]{0}', space=sflag, size = 0x4, scoped, tag = 'scoped memory for decoder_gru_forward.1']
    #allocation6 [shape = 'u8[65536]{0}', space=vmem, size = 0x10000, scoped, tag = 'input window, operand 8, single buffered']
    #allocation7 [shape = 'u8[65536]{0}', space=vmem, size = 0x10000, scoped, tag = 'input window, operand 10, single buffered']
    #allocation8 [shape = 's32[1]{0}', space=sflag, size = 0x4, scoped, tag = 'scoped memory for decoder_gru_forward.1']
    %19 = vsyncpa [#allocation3], 0
    %20 = vsyncpa [#allocation5], 0
    %21 = vsyncpa [#allocation8], 0
    // Predicated region
    $region2: #{decoder_gru_forward.1} parent=1 // pred_check
      _
    $region3: #{decoder_gru_forward.1} parent=1 // pred_check_branch
      %23 = sbr.rel (0) target = $region5
    $region4: #{decoder_gru_forward.1} parent=1 // pred_region
      _
    $region5: #{decoder_gru_forward.1} parent=1 // pred_fallthru
      _
    // Predicated region
    $region6: #{decoder_gru_forward.1} parent=1 // pred_check
      _
    $region7: #{decoder_gru_forward.1} parent=1 // pred_check_branch
      %25 = sbr.rel (0) target = $region9
    $region8: #{decoder_gru_forward.1} parent=1 // pred_region
      _
    $region9: #{decoder_gru_forward.1} parent=1 // pred_fallthru
      _
    // Predicated region
    $region10: #{decoder_gru_forward.1} parent=1 // pred_check
      _
    $region11: #{decoder_gru_forward.1} parent=1 // pred_check_branch
      %27 = sbr.rel (0) target = $region13
    $region12: #{decoder_gru_forward.1} parent=1 // pred_region
      _
    $region13: #{decoder_gru_forward.1} parent=1 // pred_fallthru
      _
    // Predicated region
    $region14: #{decoder_gru_forward.1} parent=1 // pred_check
      _
    $region15: #{decoder_gru_forward.1} parent=1 // pred_check_branch
      %29 = sbr.rel (0) target = $region17
    $region16: #{decoder_gru_forward.1} parent=1 // pred_region
      %s31 = ssub.s32 12288, 12288
      %32 = vsyncadd [#allocation3], %s31
      %s33 = sshll.u32 [#allocation2], 4
      %s34 = int_to_ptr.vmem [resolvable:$true] %s33
      %39 = dma.hbm_to_vmem [thread:$0]  %s3, 12288, %s34, [#allocation3], 384, 384, 24
    $region17: #{decoder_gru_forward.1} parent=1 // pred_fallthru
      _
    // Predicated region
    $region18: #{decoder_gru_forward.1} parent=1 // pred_check
      _
    $region19: #{decoder_gru_forward.1} parent=1 // pred_check_branch
      %41 = sbr.rel (0) target = $region21
    $region20: #{decoder_gru_forward.1} parent=1 // pred_region
      %s43 = ssub.s32 12288, 12288
      %44 = vsyncadd [#allocation5], %s43
      %s45 = sshll.u32 [#allocation4], 4
      %s46 = int_to_ptr.vmem [resolvable:$true] %s45
      %51 = dma.hbm_to_vmem [thread:$0]  %s4, 12288, %s46, [#allocation5], 384, 384, 24
    $region21: #{decoder_gru_forward.1} parent=1 // pred_fallthru
      _
    // Predicated region
    $region22: #{decoder_gru_forward.1} parent=1 // pred_check
      _
    $region23: #{decoder_gru_forward.1} parent=1 // pred_check_branch
      %53 = sbr.rel (0) target = $region25
    $region24: #{decoder_gru_forward.1} parent=1 // pred_region
      _
    $region25: #{decoder_gru_forward.1} parent=1 // pred_fallthru
      _
    // Predicated region
    $region26: #{decoder_gru_forward.1} parent=1 // pred_check
      _
    $region27: #{decoder_gru_forward.1} parent=1 // pred_check_branch
      %55 = sbr.rel (0) target = $region29
    $region28: #{decoder_gru_forward.1} parent=1 // pred_region
      _
    $region29: #{decoder_gru_forward.1} parent=1 // pred_fallthru
      _
    // Predicated region
    $region30: #{decoder_gru_forward.1} parent=1 // pred_check
      _
    $region31: #{decoder_gru_forward.1} parent=1 // pred_check_branch
      %57 = sbr.rel (0) target = $region33
    $region32: #{decoder_gru_forward.1} parent=1 // pred_region
      _
    $region33: #{decoder_gru_forward.1} parent=1 // pred_fallthru
      _
    // Predicated region
    $region34: #{decoder_gru_forward.1} parent=1 // pred_check
      _
    $region35: #{decoder_gru_forward.1} parent=1 // pred_check_branch
      %59 = sbr.rel (0) target = $region37
    $region36: #{decoder_gru_forward.1} parent=1 // pred_region
      %s61 = ssub.s32 2048, 2048
      %62 = vsyncadd [#allocation5], %s61
      %s63 = sshll.u32 [#allocation6], 4
      %s64 = int_to_ptr.vmem [resolvable:$true] %s63
      %69 = dma.hbm_to_vmem [thread:$0]  %s8, 2048, %s64, [#allocation5], 128, 128, 8
    $region37: #{decoder_gru_forward.1} parent=1 // pred_fallthru
      _
    // Predicated region
    $region38: #{decoder_gru_forward.1} parent=1 // pred_check
      _
    $region39: #{decoder_gru_forward.1} parent=1 // pred_check_branch
      %71 = sbr.rel (0) target = $region41
    $region40: #{decoder_gru_forward.1} parent=1 // pred_region
      _
    $region41: #{decoder_gru_forward.1} parent=1 // pred_fallthru
      _
    // Predicated region
    $region42: #{decoder_gru_forward.1} parent=1 // pred_check
      _
    $region43: #{decoder_gru_forward.1} parent=1 // pred_check_branch
      %73 = sbr.rel (0) target = $region45
    $region44: #{decoder_gru_forward.1} parent=1 // pred_region
      %s75 = ssub.s32 2048, 2048
      %76 = vsyncadd [#allocation8], %s75
      %s77 = sshll.u32 [#allocation7], 4
      %s78 = int_to_ptr.vmem [resolvable:$true] %s77
      %83 = dma.hbm_to_vmem [thread:$0]  %s10, 2048, %s78, [#allocation8], 128, 128, 8
    $region45: #{decoder_gru_forward.1} parent=1 // pred_fallthru
      _
    // Predicated region
    $region46: #{decoder_gru_forward.1} parent=1 // pred_check
      _
    $region47: #{decoder_gru_forward.1} parent=1 // pred_check_branch
      %85 = sbr.rel (0) target = $region49
    $region48: #{decoder_gru_forward.1} parent=1 // pred_region
      _
    $region49: #{decoder_gru_forward.1} parent=1 // pred_fallthru
      _
    // Predicated region
    $region50: #{decoder_gru_forward.1} parent=1 // pred_check
      _
    $region51: #{decoder_gru_forward.1} parent=1 // pred_check_branch
      %87 = sbr.rel (0) target = $region53
    $region52: #{decoder_gru_forward.1} parent=1 // pred_region
      %88 = dma.done [#allocation3], 12288
    $region53: #{decoder_gru_forward.1} parent=1 // pred_fallthru
      _
    // Predicated region
    $region54: #{decoder_gru_forward.1} parent=1 // pred_check
      _
    $region55: #{decoder_gru_forward.1} parent=1 // pred_check_branch
      %90 = sbr.rel (0) target = $region57
    $region56: #{decoder_gru_forward.1} parent=1 // pred_region
      %91 = dma.done [#allocation5], 12288
    $region57: #{decoder_gru_forward.1} parent=1 // pred_fallthru
      _
    // Predicated region
    $region58: #{decoder_gru_forward.1} parent=1 // pred_check
      _
    $region59: #{decoder_gru_forward.1} parent=1 // pred_check_branch
      %93 = sbr.rel (0) target = $region61
    $region60: #{decoder_gru_forward.1} parent=1 // pred_region
      %94 = dma.done [#allocation5], 2048
    $region61: #{decoder_gru_forward.1} parent=1 // pred_fallthru
      _
    // Predicated region
    $region62: #{decoder_gru_forward.1} parent=1 // pred_check
      _
    $region63: #{decoder_gru_forward.1} parent=1 // pred_check_branch
      %96 = sbr.rel (0) target = $region65
    $region64: #{decoder_gru_forward.1} parent=1 // pred_region
      %97 = dma.done [#allocation8], 2048
    $region65: #{decoder_gru_forward.1} parent=1 // pred_fallthru
      _
    %v98 = vld [vmem:[%s0] sm:$0xff]
    %v99 = vld [vmem:[%s1] sm:$0xff]
    %v100 = vld [vmem:[#allocation2] sm:$0xff]
    %v101 = vld [vmem:[#allocation2 + $0x8] sm:$0xff]
    %v102 = vld [vmem:[#allocation2 + $0x10] sm:$0xff]
    %v103 = vld [vmem:[#allocation2 + $0x18] sm:$0xff]
    %v104 = vld [vmem:[#allocation2 + $0x20] sm:$0xff]
    %v105 = vld [vmem:[#allocation2 + $0x28] sm:$0xff]
    %v106 = vld [vmem:[#allocation2 + $0x30] sm:$0xff]
    %v107 = vld [vmem:[#allocation2 + $0x38] sm:$0xff]
    %v108 = vld [vmem:[#allocation2 + $0x40] sm:$0xff]
    %v109 = vld [vmem:[#allocation2 + $0x48] sm:$0xff]
    %v110 = vld [vmem:[#allocation2 + $0x50] sm:$0xff]
    %v111 = vld [vmem:[#allocation2 + $0x58] sm:$0xff]
    %v112 = vld [vmem:[#allocation2 + $0x60] sm:$0xff]
    %v113 = vld [vmem:[#allocation2 + $0x68] sm:$0xff]
    %v114 = vld [vmem:[#allocation2 + $0x70] sm:$0xff]
    %v115 = vld [vmem:[#allocation2 + $0x78] sm:$0xff]
    %v116 = vld [vmem:[#allocation2 + $0x80] sm:$0xff]
    %v117 = vld [vmem:[#allocation2 + $0x88] sm:$0xff]
    %v118 = vld [vmem:[#allocation2 + $0x90] sm:$0xff]
    %v119 = vld [vmem:[#allocation2 + $0x98] sm:$0xff]
    %v120 = vld [vmem:[#allocation2 + $0xa0] sm:$0xff]
    %v121 = vld [vmem:[#allocation2 + $0xa8] sm:$0xff]
    %v122 = vld [vmem:[#allocation2 + $0xb0] sm:$0xff]
    %v123 = vld [vmem:[#allocation2 + $0xb8] sm:$0xff]
    %v124 = vld [vmem:[#allocation2 + $0xc0] sm:$0xff]
    %v125 = vld [vmem:[#allocation2 + $0xc8] sm:$0xff]
    %v126 = vld [vmem:[#allocation2 + $0xd0] sm:$0xff]
    %v127 = vld [vmem:[#allocation2 + $0xd8] sm:$0xff]
    %v128 = vld [vmem:[#allocation2 + $0xe0] sm:$0xff]
    %v129 = vld [vmem:[#allocation2 + $0xe8] sm:$0xff]
    %v130 = vld [vmem:[#allocation2 + $0xf0] sm:$0xff]
    %v131 = vld [vmem:[#allocation2 + $0xf8] sm:$0xff]
    %v132 = vld [vmem:[#allocation2 + $0x100] sm:$0xff]
    %v133 = vld [vmem:[#allocation2 + $0x108] sm:$0xff]
    %v134 = vld [vmem:[#allocation2 + $0x110] sm:$0xff]
    %v135 = vld [vmem:[#allocation2 + $0x118] sm:$0xff]
    %v136 = vld [vmem:[#allocation2 + $0x120] sm:$0xff]
    %v137 = vld [vmem:[#allocation2 + $0x128] sm:$0xff]
    %v138 = vld [vmem:[#allocation2 + $0x130] sm:$0xff]
    %v139 = vld [vmem:[#allocation2 + $0x138] sm:$0xff]
    %v140 = vld [vmem:[#allocation2 + $0x140] sm:$0xff]
    %v141 = vld [vmem:[#allocation2 + $0x148] sm:$0xff]
    %v142 = vld [vmem:[#allocation2 + $0x150] sm:$0xff]
    %v143 = vld [vmem:[#allocation2 + $0x158] sm:$0xff]
    %v144 = vld [vmem:[#allocation2 + $0x160] sm:$0xff]
    %v145 = vld [vmem:[#allocation2 + $0x168] sm:$0xff]
    %v146 = vld [vmem:[#allocation2 + $0x170] sm:$0xff]
    %v147 = vld [vmem:[#allocation2 + $0x178] sm:$0xff]
    %v148 = vld [vmem:[%s5] sm:$0x7]
    %v150 = vlaneseq
    %v151 = vshrl.u32 %v150, 7
    %v152 = vsub.s32 0, %v151
    %v153 = vrot.slane %v148, %v152
    %v154 = vlaneseq
    %v155 = vshrl.u32 %v154, 7
    %v156 = vsub.s32 1, %v155
    %v157 = vrot.slane %v148, %v156
    %v158 = vlaneseq
    %v159 = vshrl.u32 %v158, 7
    %v160 = vsub.s32 2, %v159
    %v161 = vrot.slane %v148, %v160
    %165 = vmatprep.subr.mxu0 %v101
    %166 = vmatpush1.msra.mxu0 %v100
    %167 = vmatprep.subr.mxu0 %v104
    %168 = vmatpush1.msra.mxu0 %v103
    %169 = vmatprep.subr.mxu0 %v107
    %170 = vmatpush1.msra.mxu0 %v106
    %171 = vmatprep.subr.mxu0 %v110
    %172 = vmatpush1.msra.mxu0 %v109
    %173 = vmatprep.subr.mxu0 %v113
    %174 = vmatpush1.msra.mxu0 %v112
    %175 = vmatprep.subr.mxu0 %v116
    %176 = vmatpush1.msra.mxu0 %v115
    %177 = vmatprep.subr.mxu0 %v119
    %178 = vmatpush1.msra.mxu0 %v118
    %179 = vmatprep.subr.mxu0 %v122
    %180 = vmatpush1.msra.mxu0 %v121
    %181 = vmatprep.subr.mxu0 %v125
    %182 = vmatpush1.msra.mxu0 %v124
    %183 = vmatprep.subr.mxu0 %v128
    %184 = vmatpush1.msra.mxu0 %v127
    %185 = vmatprep.subr.mxu0 %v131
    %186 = vmatpush1.msra.mxu0 %v130
    %187 = vmatprep.subr.mxu0 %v134
    %188 = vmatpush1.msra.mxu0 %v133
    %189 = vmatprep.subr.mxu0 %v137
    %190 = vmatpush1.msra.mxu0 %v136
    %191 = vmatprep.subr.mxu0 %v140
    %192 = vmatpush1.msra.mxu0 %v139
    %193 = vmatprep.subr.mxu0 %v143
    %194 = vmatpush1.msra.mxu0 %v142
    %195 = vmatprep.subr.mxu0 %v146
    %196 = vmatpush1.msra.mxu0 %v145
    %197 = vmatprep.subr.mxu0 0.0
    %198 = vmatpush1.msra.mxu0 0.0
    %199 = vmatprep.subr.mxu0 0.0
    %200 = vmatpush1.msra.mxu0 0.0
    %201 = vmatprep.subr.mxu0 0.0
    %202 = vmatpush1.msra.mxu0 0.0
    %203 = vmatprep.subr.mxu0 0.0
    %204 = vmatpush1.msra.mxu0 0.0
    %205 = vmatprep.subr.mxu0 0.0
    %206 = vmatpush1.msra.mxu0 0.0
    %207 = vmatprep.subr.mxu0 0.0
    %208 = vmatpush1.msra.mxu0 0.0
    %209 = vmatprep.subr.mxu0 0.0
    %210 = vmatpush1.msra.mxu0 0.0
    %211 = vmatprep.subr.mxu0 0.0
    %212 = vmatpush1.msra.mxu0 0.0
    %213 = vmatprep.subr.mxu0 0.0
    %214 = vmatpush1.msra.mxu0 0.0
    %215 = vmatprep.subr.mxu0 0.0
    %216 = vmatpush1.msra.mxu0 0.0
    %217 = vmatprep.subr.mxu0 0.0
    %218 = vmatpush1.msra.mxu0 0.0
    %219 = vmatprep.subr.mxu0 0.0
    %220 = vmatpush1.msra.mxu0 0.0
    %221 = vmatprep.subr.mxu0 0.0
    %222 = vmatpush1.msra.mxu0 0.0
    %223 = vmatprep.subr.mxu0 0.0
    %224 = vmatpush1.msra.mxu0 0.0
    %225 = vmatprep.subr.mxu0 0.0
    %226 = vmatpush1.msra.mxu0 0.0
    %227 = vmatprep.subr.mxu0 0.0
    %228 = vmatpush1.msra.mxu0 0.0
    %229 = vmatprep.mubr.f32.mxu0 0.0
    %230 = vmatmul.mubr.f32.gmra.mrb[0].mxu0 %v98
    %v231 = vpop.f32.mrb[0].mxu0
    %v232 = vadd.f32 %v153, %v231
    %v233 = vpop.f32.mrb[0].mxu0
    %v234 = vadd.f32 %v157, %v233
    %235 = vdwg.mxu0
    %236 = vmatprep.subr.mxu0 0.0
    %237 = vmatpush1.msra.mxu0 %v102
    %238 = vmatprep.subr.mxu0 0.0
    %239 = vmatpush1.msra.mxu0 %v105
    %240 = vmatprep.subr.mxu0 0.0
    %241 = vmatpush1.msra.mxu0 %v108
    %242 = vmatprep.subr.mxu0 0.0
    %243 = vmatpush1.msra.mxu0 %v111
    %244 = vmatprep.subr.mxu0 0.0
    %245 = vmatpush1.msra.mxu0 %v114
    %246 = vmatprep.subr.mxu0 0.0
    %247 = vmatpush1.msra.mxu0 %v117
    %248 = vmatprep.subr.mxu0 0.0
    %249 = vmatpush1.msra.mxu0 %v120
    %250 = vmatprep.subr.mxu0 0.0
    %251 = vmatpush1.msra.mxu0 %v123
    %252 = vmatprep.subr.mxu0 0.0
    %253 = vmatpush1.msra.mxu0 %v126
    %254 = vmatprep.subr.mxu0 0.0
    %255 = vmatpush1.msra.mxu0 %v129
    %256 = vmatprep.subr.mxu0 0.0
    %257 = vmatpush1.msra.mxu0 %v132
    %258 = vmatprep.subr.mxu0 0.0
    %259 = vmatpush1.msra.mxu0 %v135
    %260 = vmatprep.subr.mxu0 0.0
    %261 = vmatpush1.msra.mxu0 %v138
    %262 = vmatprep.subr.mxu0 0.0
    %263 = vmatpush1.msra.mxu0 %v141
    %264 = vmatprep.subr.mxu0 0.0
    %265 = vmatpush1.msra.mxu0 %v144
    %266 = vmatprep.subr.mxu0 0.0
    %267 = vmatpush1.msra.mxu0 %v147
    %268 = vmatprep.subr.mxu0 0.0
    %269 = vmatpush1.msra.mxu0 0.0
    %270 = vmatprep.subr.mxu0 0.0
    %271 = vmatpush1.msra.mxu0 0.0
    %272 = vmatprep.subr.mxu0 0.0
    %273 = vmatpush1.msra.mxu0 0.0
    %274 = vmatprep.subr.mxu0 0.0
    %275 = vmatpush1.msra.mxu0 0.0
    %276 = vmatprep.subr.mxu0 0.0
    %277 = vmatpush1.msra.mxu0 0.0
    %278 = vmatprep.subr.mxu0 0.0
    %279 = vmatpush1.msra.mxu0 0.0
    %280 = vmatprep.subr.mxu0 0.0
    %281 = vmatpush1.msra.mxu0 0.0
    %282 = vmatprep.subr.mxu0 0.0
    %283 = vmatpush1.msra.mxu0 0.0
    %284 = vmatprep.subr.mxu0 0.0
    %285 = vmatpush1.msra.mxu0 0.0
    %286 = vmatprep.subr.mxu0 0.0
    %287 = vmatpush1.msra.mxu0 0.0
    %288 = vmatprep.subr.mxu0 0.0
    %289 = vmatpush1.msra.mxu0 0.0
    %290 = vmatprep.subr.mxu0 0.0
    %291 = vmatpush1.msra.mxu0 0.0
    %292 = vmatprep.subr.mxu0 0.0
    %293 = vmatpush1.msra.mxu0 0.0
    %294 = vmatprep.subr.mxu0 0.0
    %295 = vmatpush1.msra.mxu0 0.0
    %296 = vmatprep.subr.mxu0 0.0
    %297 = vmatpush1.msra.mxu0 0.0
    %298 = vmatprep.subr.mxu0 0.0
    %299 = vmatpush1.msra.mxu0 0.0
    %300 = vmatprep.mubr.f32.mxu0 0.0
    %301 = vmatmul.mubr.f32.gmra.mrb[0].mxu0 %v98
    %v302 = vpop.f32.mrb[0].mxu0
    %v303 = vadd.f32 %v161, %v302
    %v304 = vpop.f32.mrb[0].mxu0
    %305 = vdwg.mxu0
    %v306 = vld [vmem:[#allocation4] sm:$0xff]
    %v307 = vld [vmem:[#allocation4 + $0x8] sm:$0xff]
    %v308 = vld [vmem:[#allocation4 + $0x10] sm:$0xff]
    %v309 = vld [vmem:[#allocation4 + $0x18] sm:$0xff]
    %v310 = vld [vmem:[#allocation4 + $0x20] sm:$0xff]
    %v311 = vld [vmem:[#allocation4 + $0x28] sm:$0xff]
    %v312 = vld [vmem:[#allocation4 + $0x30] sm:$0xff]
    %v313 = vld [vmem:[#allocation4 + $0x38] sm:$0xff]
    %v314 = vld [vmem:[#allocation4 + $0x40] sm:$0xff]
    %v315 = vld [vmem:[#allocation4 + $0x48] sm:$0xff]
    %v316 = vld [vmem:[#allocation4 + $0x50] sm:$0xff]
    %v317 = vld [vmem:[#allocation4 + $0x58] sm:$0xff]
    %v318 = vld [vmem:[#allocation4 + $0x60] sm:$0xff]
    %v319 = vld [vmem:[#allocation4 + $0x68] sm:$0xff]
    %v320 = vld [vmem:[#allocation4 + $0x70] sm:$0xff]
    %v321 = vld [vmem:[#allocation4 + $0x78] sm:$0xff]
    %v322 = vld [vmem:[#allocation4 + $0x80] sm:$0xff]
    %v323 = vld [vmem:[#allocation4 + $0x88] sm:$0xff]
    %v324 = vld [vmem:[#allocation4 + $0x90] sm:$0xff]
    %v325 = vld [vmem:[#allocation4 + $0x98] sm:$0xff]
    %v326 = vld [vmem:[#allocation4 + $0xa0] sm:$0xff]
    %v327 = vld [vmem:[#allocation4 + $0xa8] sm:$0xff]
    %v328 = vld [vmem:[#allocation4 + $0xb0] sm:$0xff]
    %v329 = vld [vmem:[#allocation4 + $0xb8] sm:$0xff]
    %v330 = vld [vmem:[#allocation4 + $0xc0] sm:$0xff]
    %v331 = vld [vmem:[#allocation4 + $0xc8] sm:$0xff]
    %v332 = vld [vmem:[#allocation4 + $0xd0] sm:$0xff]
    %v333 = vld [vmem:[#allocation4 + $0xd8] sm:$0xff]
    %v334 = vld [vmem:[#allocation4 + $0xe0] sm:$0xff]
    %v335 = vld [vmem:[#allocation4 + $0xe8] sm:$0xff]
    %v336 = vld [vmem:[#allocation4 + $0xf0] sm:$0xff]
    %v337 = vld [vmem:[#allocation4 + $0xf8] sm:$0xff]
    %v338 = vld [vmem:[#allocation4 + $0x100] sm:$0xff]
    %v339 = vld [vmem:[#allocation4 + $0x108] sm:$0xff]
    %v340 = vld [vmem:[#allocation4 + $0x110] sm:$0xff]
    %v341 = vld [vmem:[#allocation4 + $0x118] sm:$0xff]
    %v342 = vld [vmem:[#allocation4 + $0x120] sm:$0xff]
    %v343 = vld [vmem:[#allocation4 + $0x128] sm:$0xff]
    %v344 = vld [vmem:[#allocation4 + $0x130] sm:$0xff]
    %v345 = vld [vmem:[#allocation4 + $0x138] sm:$0xff]
    %v346 = vld [vmem:[#allocation4 + $0x140] sm:$0xff]
    %v347 = vld [vmem:[#allocation4 + $0x148] sm:$0xff]
    %v348 = vld [vmem:[#allocation4 + $0x150] sm:$0xff]
    %v349 = vld [vmem:[#allocation4 + $0x158] sm:$0xff]
    %v350 = vld [vmem:[#allocation4 + $0x160] sm:$0xff]
    %v351 = vld [vmem:[#allocation4 + $0x168] sm:$0xff]
    %v352 = vld [vmem:[#allocation4 + $0x170] sm:$0xff]
    %v353 = vld [vmem:[#allocation4 + $0x178] sm:$0xff]
    %354 = vmatprep.subr.mxu0 %v307
    %355 = vmatpush1.msra.mxu0 %v306
    %356 = vmatprep.subr.mxu0 %v310
    %357 = vmatpush1.msra.mxu0 %v309
    %358 = vmatprep.subr.mxu0 %v313
    %359 = vmatpush1.msra.mxu0 %v312
    %360 = vmatprep.subr.mxu0 %v316
    %361 = vmatpush1.msra.mxu0 %v315
    %362 = vmatprep.subr.mxu0 %v319
    %363 = vmatpush1.msra.mxu0 %v318
    %364 = vmatprep.subr.mxu0 %v322
    %365 = vmatpush1.msra.mxu0 %v321
    %366 = vmatprep.subr.mxu0 %v325
    %367 = vmatpush1.msra.mxu0 %v324
    %368 = vmatprep.subr.mxu0 %v328
    %369 = vmatpush1.msra.mxu0 %v327
    %370 = vmatprep.subr.mxu0 %v331
    %371 = vmatpush1.msra.mxu0 %v330
    %372 = vmatprep.subr.mxu0 %v334
    %373 = vmatpush1.msra.mxu0 %v333
    %374 = vmatprep.subr.mxu0 %v337
    %375 = vmatpush1.msra.mxu0 %v336
    %376 = vmatprep.subr.mxu0 %v340
    %377 = vmatpush1.msra.mxu0 %v339
    %378 = vmatprep.subr.mxu0 %v343
    %379 = vmatpush1.msra.mxu0 %v342
    %380 = vmatprep.subr.mxu0 %v346
    %381 = vmatpush1.msra.mxu0 %v345
    %382 = vmatprep.subr.mxu0 %v349
    %383 = vmatpush1.msra.mxu0 %v348
    %384 = vmatprep.subr.mxu0 %v352
    %385 = vmatpush1.msra.mxu0 %v351
    %386 = vmatprep.subr.mxu0 0.0
    %387 = vmatpush1.msra.mxu0 0.0
    %388 = vmatprep.subr.mxu0 0.0
    %389 = vmatpush1.msra.mxu0 0.0
    %390 = vmatprep.subr.mxu0 0.0
    %391 = vmatpush1.msra.mxu0 0.0
    %392 = vmatprep.subr.mxu0 0.0
    %393 = vmatpush1.msra.mxu0 0.0
    %394 = vmatprep.subr.mxu0 0.0
    %395 = vmatpush1.msra.mxu0 0.0
    %396 = vmatprep.subr.mxu0 0.0
    %397 = vmatpush1.msra.mxu0 0.0
    %398 = vmatprep.subr.mxu0 0.0
    %399 = vmatpush1.msra.mxu0 0.0
    %400 = vmatprep.subr.mxu0 0.0
    %401 = vmatpush1.msra.mxu0 0.0
    %402 = vmatprep.subr.mxu0 0.0
    %403 = vmatpush1.msra.mxu0 0.0
    %404 = vmatprep.subr.mxu0 0.0
    %405 = vmatpush1.msra.mxu0 0.0
    %406 = vmatprep.subr.mxu0 0.0
    %407 = vmatpush1.msra.mxu0 0.0
    %408 = vmatprep.subr.mxu0 0.0
    %409 = vmatpush1.msra.mxu0 0.0
    %410 = vmatprep.subr.mxu0 0.0
    %411 = vmatpush1.msra.mxu0 0.0
    %412 = vmatprep.subr.mxu0 0.0
    %413 = vmatpush1.msra.mxu0 0.0
    %414 = vmatprep.subr.mxu0 0.0
    %415 = vmatpush1.msra.mxu0 0.0
    %416 = vmatprep.subr.mxu0 0.0
    %417 = vmatpush1.msra.mxu0 0.0
    %418 = vmatprep.mubr.f32.mxu0 0.0
    %419 = vmatmul.mubr.f32.gmra.mrb[0].mxu0 %v99
    %v420 = vpop.f32.mrb[0].mxu0
    %v421 = vadd.f32 0.0, %v420
    %v422 = vpop.f32.mrb[0].mxu0
    %v423 = vadd.f32 0.0, %v422
    %424 = vdwg.mxu0
    %425 = vmatprep.subr.mxu0 0.0
    %426 = vmatpush1.msra.mxu0 %v308
    %427 = vmatprep.subr.mxu0 0.0
    %428 = vmatpush1.msra.mxu0 %v311
    %429 = vmatprep.subr.mxu0 0.0
    %430 = vmatpush1.msra.mxu0 %v314
    %431 = vmatprep.subr.mxu0 0.0
    %432 = vmatpush1.msra.mxu0 %v317
    %433 = vmatprep.subr.mxu0 0.0
    %434 = vmatpush1.msra.mxu0 %v320
    %435 = vmatprep.subr.mxu0 0.0
    %436 = vmatpush1.msra.mxu0 %v323
    %437 = vmatprep.subr.mxu0 0.0
    %438 = vmatpush1.msra.mxu0 %v326
    %439 = vmatprep.subr.mxu0 0.0
    %440 = vmatpush1.msra.mxu0 %v329
    %441 = vmatprep.subr.mxu0 0.0
    %442 = vmatpush1.msra.mxu0 %v332
    %443 = vmatprep.subr.mxu0 0.0
    %444 = vmatpush1.msra.mxu0 %v335
    %445 = vmatprep.subr.mxu0 0.0
    %446 = vmatpush1.msra.mxu0 %v338
    %447 = vmatprep.subr.mxu0 0.0
    %448 = vmatpush1.msra.mxu0 %v341
    %449 = vmatprep.subr.mxu0 0.0
    %450 = vmatpush1.msra.mxu0 %v344
    %451 = vmatprep.subr.mxu0 0.0
    %452 = vmatpush1.msra.mxu0 %v347
    %453 = vmatprep.subr.mxu0 0.0
    %454 = vmatpush1.msra.mxu0 %v350
    %455 = vmatprep.subr.mxu0 0.0
    %456 = vmatpush1.msra.mxu0 %v353
    %457 = vmatprep.subr.mxu0 0.0
    %458 = vmatpush1.msra.mxu0 0.0
    %459 = vmatprep.subr.mxu0 0.0
    %460 = vmatpush1.msra.mxu0 0.0
    %461 = vmatprep.subr.mxu0 0.0
    %462 = vmatpush1.msra.mxu0 0.0
    %463 = vmatprep.subr.mxu0 0.0
    %464 = vmatpush1.msra.mxu0 0.0
    %465 = vmatprep.subr.mxu0 0.0
    %466 = vmatpush1.msra.mxu0 0.0
    %467 = vmatprep.subr.mxu0 0.0
    %468 = vmatpush1.msra.mxu0 0.0
    %469 = vmatprep.subr.mxu0 0.0
    %470 = vmatpush1.msra.mxu0 0.0
    %471 = vmatprep.subr.mxu0 0.0
    %472 = vmatpush1.msra.mxu0 0.0
    %473 = vmatprep.subr.mxu0 0.0
    %474 = vmatpush1.msra.mxu0 0.0
    %475 = vmatprep.subr.mxu0 0.0
    %476 = vmatpush1.msra.mxu0 0.0
    %477 = vmatprep.subr.mxu0 0.0
    %478 = vmatpush1.msra.mxu0 0.0
    %479 = vmatprep.subr.mxu0 0.0
    %480 = vmatpush1.msra.mxu0 0.0
    %481 = vmatprep.subr.mxu0 0.0
    %482 = vmatpush1.msra.mxu0 0.0
    %483 = vmatprep.subr.mxu0 0.0
    %484 = vmatpush1.msra.mxu0 0.0
    %485 = vmatprep.subr.mxu0 0.0
    %486 = vmatpush1.msra.mxu0 0.0
    %487 = vmatprep.subr.mxu0 0.0
    %488 = vmatpush1.msra.mxu0 0.0
    %489 = vmatprep.mubr.f32.mxu0 0.0
    %490 = vmatmul.mubr.f32.gmra.mrb[0].mxu0 %v99
    %v491 = vpop.f32.mrb[0].mxu0
    %v492 = vadd.f32 0.0, %v491
    %v493 = vpop.f32.mrb[0].mxu0
    %494 = vdwg.mxu0
    %v495 = vadd.f32 %v232, %v421
    %v496 = vxor.u32 %v495, 2147483648
    %v497 = vmul.f32 %v496, 1.442695
    %v498 = vpow.pop %v497
    %v499 = vadd.f32 %v498, 1.0
    %v500 = vrcp.pop %v499
    %v501 = vmul.f32 1.0, %v500
    %v502 = vadd.f32 %v234, %v423
    %v503 = vxor.u32 %v502, 2147483648
    %v504 = vmul.f32 %v503, 1.442695
    %v505 = vpow.pop %v504
    %v506 = vadd.f32 %v505, 1.0
    %v507 = vrcp.pop %v506
    %v508 = vmul.f32 1.0, %v507
    %v509 = vld [vmem:[%s6] sm:$0x1]
    %v511 = vlaneseq
    %v512 = vshrl.u32 %v511, 7
    %v513 = vsub.s32 0, %v512
    %v514 = vrot.slane %v509, %v513
    %v516 = vadd.f32 %v492, %v514
    %v517 = vmul.f32 %v501, %v516
    %v518 = vadd.f32 %v303, %v517
    %v519 = vtanh.pop %v518
    %v520 = vsub.f32 1.0, %v508
    %v521 = vmul.f32 %v520, %v519
    %v522 = vmul.f32 %v508, %v99
    %v523 = vadd.f32 %v521, %v522
    %524 = vst [vmem:[%s13] sm:$0xff] %v523
    %s525 = scalar_lea.vmem %s1, 8
    %v526 = vld [vmem:[%s525] sm:$0xff]
    %s527 = scalar_lea.vmem [#allocation2], 384
    %v528 = vld [vmem:[%s527] sm:$0xff]
    %v529 = vld [vmem:[%s527 + $0x8] sm:$0xff]
    %v530 = vld [vmem:[%s527 + $0x10] sm:$0xff]
    %v531 = vld [vmem:[%s527 + $0x18] sm:$0xff]
    %v532 = vld [vmem:[%s527 + $0x20] sm:$0xff]
    %v533 = vld [vmem:[%s527 + $0x28] sm:$0xff]
    %v534 = vld [vmem:[%s527 + $0x30] sm:$0xff]
    %v535 = vld [vmem:[%s527 + $0x38] sm:$0xff]
    %v536 = vld [vmem:[%s527 + $0x40] sm:$0xff]
    %v537 = vld [vmem:[%s527 + $0x48] sm:$0xff]
    %v538 = vld [vmem:[%s527 + $0x50] sm:$0xff]
    %v539 = vld [vmem:[%s527 + $0x58] sm:$0xff]
    %v540 = vld [vmem:[%s527 + $0x60] sm:$0xff]
    %v541 = vld [vmem:[%s527 + $0x68] sm:$0xff]
    %v542 = vld [vmem:[%s527 + $0x70] sm:$0xff]
    %v543 = vld [vmem:[%s527 + $0x78] sm:$0xff]
    %v544 = vld [vmem:[%s527 + $0x80] sm:$0xff]
    %v545 = vld [vmem:[%s527 + $0x88] sm:$0xff]
    %v546 = vld [vmem:[%s527 + $0x90] sm:$0xff]
    %v547 = vld [vmem:[%s527 + $0x98] sm:$0xff]
    %v548 = vld [vmem:[%s527 + $0xa0] sm:$0xff]
    %v549 = vld [vmem:[%s527 + $0xa8] sm:$0xff]
    %v550 = vld [vmem:[%s527 + $0xb0] sm:$0xff]
    %v551 = vld [vmem:[%s527 + $0xb8] sm:$0xff]
    %v552 = vld [vmem:[%s527 + $0xc0] sm:$0xff]
    %v553 = vld [vmem:[%s527 + $0xc8] sm:$0xff]
    %v554 = vld [vmem:[%s527 + $0xd0] sm:$0xff]
    %v555 = vld [vmem:[%s527 + $0xd8] sm:$0xff]
    %v556 = vld [vmem:[%s527 + $0xe0] sm:$0xff]
    %v557 = vld [vmem:[%s527 + $0xe8] sm:$0xff]
    %v558 = vld [vmem:[%s527 + $0xf0] sm:$0xff]
    %v559 = vld [vmem:[%s527 + $0xf8] sm:$0xff]
    %v560 = vld [vmem:[%s527 + $0x100] sm:$0xff]
    %v561 = vld [vmem:[%s527 + $0x108] sm:$0xff]
    %v562 = vld [vmem:[%s527 + $0x110] sm:$0xff]
    %v563 = vld [vmem:[%s527 + $0x118] sm:$0xff]
    %v564 = vld [vmem:[%s527 + $0x120] sm:$0xff]
    %v565 = vld [vmem:[%s527 + $0x128] sm:$0xff]
    %v566 = vld [vmem:[%s527 + $0x130] sm:$0xff]
    %v567 = vld [vmem:[%s527 + $0x138] sm:$0xff]
    %v568 = vld [vmem:[%s527 + $0x140] sm:$0xff]
    %v569 = vld [vmem:[%s527 + $0x148] sm:$0xff]
    %v570 = vld [vmem:[%s527 + $0x150] sm:$0xff]
    %v571 = vld [vmem:[%s527 + $0x158] sm:$0xff]
    %v572 = vld [vmem:[%s527 + $0x160] sm:$0xff]
    %v573 = vld [vmem:[%s527 + $0x168] sm:$0xff]
    %v574 = vld [vmem:[%s527 + $0x170] sm:$0xff]
    %v575 = vld [vmem:[%s527 + $0x178] sm:$0xff]
    %s576 = scalar_lea.vmem %s5, 3
    %v577 = vld [vmem:[%s576] sm:$0x7]
    %v579 = vlaneseq
    %v580 = vshrl.u32 %v579, 7
    %v581 = vsub.s32 0, %v580
    %v582 = vrot.slane %v577, %v581
    %v583 = vlaneseq
    %v584 = vshrl.u32 %v583, 7
    %v585 = vsub.s32 1, %v584
    %v586 = vrot.slane %v577, %v585
    %v587 = vlaneseq
    %v588 = vshrl.u32 %v587, 7
    %v589 = vsub.s32 2, %v588
    %v590 = vrot.slane %v577, %v589
    %594 = vmatprep.subr.mxu0 %v529
    %595 = vmatpush1.msra.mxu0 %v528
    %596 = vmatprep.subr.mxu0 %v532
    %597 = vmatpush1.msra.mxu0 %v531
    %598 = vmatprep.subr.mxu0 %v535
    %599 = vmatpush1.msra.mxu0 %v534
    %600 = vmatprep.subr.mxu0 %v538
    %601 = vmatpush1.msra.mxu0 %v537
    %602 = vmatprep.subr.mxu0 %v541
    %603 = vmatpush1.msra.mxu0 %v540
    %604 = vmatprep.subr.mxu0 %v544
    %605 = vmatpush1.msra.mxu0 %v543
    %606 = vmatprep.subr.mxu0 %v547
    %607 = vmatpush1.msra.mxu0 %v546
    %608 = vmatprep.subr.mxu0 %v550
    %609 = vmatpush1.msra.mxu0 %v549
    %610 = vmatprep.subr.mxu0 %v553
    %611 = vmatpush1.msra.mxu0 %v552
    %612 = vmatprep.subr.mxu0 %v556
    %613 = vmatpush1.msra.mxu0 %v555
    %614 = vmatprep.subr.mxu0 %v559
    %615 = vmatpush1.msra.mxu0 %v558
    %616 = vmatprep.subr.mxu0 %v562
    %617 = vmatpush1.msra.mxu0 %v561
    %618 = vmatprep.subr.mxu0 %v565
    %619 = vmatpush1.msra.mxu0 %v564
    %620 = vmatprep.subr.mxu0 %v568
    %621 = vmatpush1.msra.mxu0 %v567
    %622 = vmatprep.subr.mxu0 %v571
    %623 = vmatpush1.msra.mxu0 %v570
    %624 = vmatprep.subr.mxu0 %v574
    %625 = vmatpush1.msra.mxu0 %v573
    %626 = vmatprep.subr.mxu0 0.0
    %627 = vmatpush1.msra.mxu0 0.0
    %628 = vmatprep.subr.mxu0 0.0
    %629 = vmatpush1.msra.mxu0 0.0
    %630 = vmatprep.subr.mxu0 0.0
    %631 = vmatpush1.msra.mxu0 0.0
    %632 = vmatprep.subr.mxu0 0.0
    %633 = vmatpush1.msra.mxu0 0.0
    %634 = vmatprep.subr.mxu0 0.0
    %635 = vmatpush1.msra.mxu0 0.0
    %636 = vmatprep.subr.mxu0 0.0
    %637 = vmatpush1.msra.mxu0 0.0
    %638 = vmatprep.subr.mxu0 0.0
    %639 = vmatpush1.msra.mxu0 0.0
    %640 = vmatprep.subr.mxu0 0.0
    %641 = vmatpush1.msra.mxu0 0.0
    %642 = vmatprep.subr.mxu0 0.0
    %643 = vmatpush1.msra.mxu0 0.0
    %644 = vmatprep.subr.mxu0 0.0
    %645 = vmatpush1.msra.mxu0 0.0
    %646 = vmatprep.subr.mxu0 0.0
    %647 = vmatpush1.msra.mxu0 0.0
    %648 = vmatprep.subr.mxu0 0.0
    %649 = vmatpush1.msra.mxu0 0.0
    %650 = vmatprep.subr.mxu0 0.0
    %651 = vmatpush1.msra.mxu0 0.0
    %652 = vmatprep.subr.mxu0 0.0
    %653 = vmatpush1.msra.mxu0 0.0
    %654 = vmatprep.subr.mxu0 0.0
    %655 = vmatpush1.msra.mxu0 0.0
    %656 = vmatprep.subr.mxu0 0.0
    %657 = vmatpush1.msra.mxu0 0.0
    %658 = vmatprep.mubr.f32.mxu0 0.0
    %659 = vmatmul.mubr.f32.gmra.mrb[0].mxu0 %v523
    %v660 = vpop.f32.mrb[0].mxu0
    %v661 = vadd.f32 %v582, %v660
    %v662 = vpop.f32.mrb[0].mxu0
    %v663 = vadd.f32 %v586, %v662
    %664 = vdwg.mxu0
    %665 = vmatprep.subr.mxu0 0.0
    %666 = vmatpush1.msra.mxu0 %v530
    %667 = vmatprep.subr.mxu0 0.0
    %668 = vmatpush1.msra.mxu0 %v533
    %669 = vmatprep.subr.mxu0 0.0
    %670 = vmatpush1.msra.mxu0 %v536
    %671 = vmatprep.subr.mxu0 0.0
    %672 = vmatpush1.msra.mxu0 %v539
    %673 = vmatprep.subr.mxu0 0.0
    %674 = vmatpush1.msra.mxu0 %v542
    %675 = vmatprep.subr.mxu0 0.0
    %676 = vmatpush1.msra.mxu0 %v545
    %677 = vmatprep.subr.mxu0 0.0
    %678 = vmatpush1.msra.mxu0 %v548
    %679 = vmatprep.subr.mxu0 0.0
    %680 = vmatpush1.msra.mxu0 %v551
    %681 = vmatprep.subr.mxu0 0.0
    %682 = vmatpush1.msra.mxu0 %v554
    %683 = vmatprep.subr.mxu0 0.0
    %684 = vmatpush1.msra.mxu0 %v557
    %685 = vmatprep.subr.mxu0 0.0
    %686 = vmatpush1.msra.mxu0 %v560
    %687 = vmatprep.subr.mxu0 0.0
    %688 = vmatpush1.msra.mxu0 %v563
    %689 = vmatprep.subr.mxu0 0.0
    %690 = vmatpush1.msra.mxu0 %v566
    %691 = vmatprep.subr.mxu0 0.0
    %692 = vmatpush1.msra.mxu0 %v569
    %693 = vmatprep.subr.mxu0 0.0
    %694 = vmatpush1.msra.mxu0 %v572
    %695 = vmatprep.subr.mxu0 0.0
    %696 = vmatpush1.msra.mxu0 %v575
    %697 = vmatprep.subr.mxu0 0.0
    %698 = vmatpush1.msra.mxu0 0.0
    %699 = vmatprep.subr.mxu0 0.0
    %700 = vmatpush1.msra.mxu0 0.0
    %701 = vmatprep.subr.mxu0 0.0
    %702 = vmatpush1.msra.mxu0 0.0
    %703 = vmatprep.subr.mxu0 0.0
    %704 = vmatpush1.msra.mxu0 0.0
    %705 = vmatprep.subr.mxu0 0.0
    %706 = vmatpush1.msra.mxu0 0.0
    %707 = vmatprep.subr.mxu0 0.0
    %708 = vmatpush1.msra.mxu0 0.0
    %709 = vmatprep.subr.mxu0 0.0
    %710 = vmatpush1.msra.mxu0 0.0
    %711 = vmatprep.subr.mxu0 0.0
    %712 = vmatpush1.msra.mxu0 0.0
    %713 = vmatprep.subr.mxu0 0.0
    %714 = vmatpush1.msra.mxu0 0.0
    %715 = vmatprep.subr.mxu0 0.0
    %716 = vmatpush1.msra.mxu0 0.0
    %717 = vmatprep.subr.mxu0 0.0
    %718 = vmatpush1.msra.mxu0 0.0
    %719 = vmatprep.subr.mxu0 0.0
    %720 = vmatpush1.msra.mxu0 0.0
    %721 = vmatprep.subr.mxu0 0.0
    %722 = vmatpush1.msra.mxu0 0.0
    %723 = vmatprep.subr.mxu0 0.0
    %724 = vmatpush1.msra.mxu0 0.0
    %725 = vmatprep.subr.mxu0 0.0
    %726 = vmatpush1.msra.mxu0 0.0
    %727 = vmatprep.subr.mxu0 0.0
    %728 = vmatpush1.msra.mxu0 0.0
    %729 = vmatprep.mubr.f32.mxu0 0.0
    %730 = vmatmul.mubr.f32.gmra.mrb[0].mxu0 %v523
    %v731 = vpop.f32.mrb[0].mxu0
    %v732 = vadd.f32 %v590, %v731
    %v733 = vpop.f32.mrb[0].mxu0
    %734 = vdwg.mxu0
    %s735 = scalar_lea.vmem [#allocation4], 384
    %v736 = vld [vmem:[%s735] sm:$0xff]
    %v737 = vld [vmem:[%s735 + $0x8] sm:$0xff]
    %v738 = vld [vmem:[%s735 + $0x10] sm:$0xff]
    %v739 = vld [vmem:[%s735 + $0x18] sm:$0xff]
    %v740 = vld [vmem:[%s735 + $0x20] sm:$0xff]
    %v741 = vld [vmem:[%s735 + $0x28] sm:$0xff]
    %v742 = vld [vmem:[%s735 + $0x30] sm:$0xff]
    %v743 = vld [vmem:[%s735 + $0x38] sm:$0xff]
    %v744 = vld [vmem:[%s735 + $0x40] sm:$0xff]
    %v745 = vld [vmem:[%s735 + $0x48] sm:$0xff]
    %v746 = vld [vmem:[%s735 + $0x50] sm:$0xff]
    %v747 = vld [vmem:[%s735 + $0x58] sm:$0xff]
    %v748 = vld [vmem:[%s735 + $0x60] sm:$0xff]
    %v749 = vld [vmem:[%s735 + $0x68] sm:$0xff]
    %v750 = vld [vmem:[%s735 + $0x70] sm:$0xff]
    %v751 = vld [vmem:[%s735 + $0x78] sm:$0xff]
    %v752 = vld [vmem:[%s735 + $0x80] sm:$0xff]
    %v753 = vld [vmem:[%s735 + $0x88] sm:$0xff]
    %v754 = vld [vmem:[%s735 + $0x90] sm:$0xff]
    %v755 = vld [vmem:[%s735 + $0x98] sm:$0xff]
    %v756 = vld [vmem:[%s735 + $0xa0] sm:$0xff]
    %v757 = vld [vmem:[%s735 + $0xa8] sm:$0xff]
    %v758 = vld [vmem:[%s735 + $0xb0] sm:$0xff]
    %v759 = vld [vmem:[%s735 + $0xb8] sm:$0xff]
    %v760 = vld [vmem:[%s735 + $0xc0] sm:$0xff]
    %v761 = vld [vmem:[%s735 + $0xc8] sm:$0xff]
    %v762 = vld [vmem:[%s735 + $0xd0] sm:$0xff]
    %v763 = vld [vmem:[%s735 + $0xd8] sm:$0xff]
    %v764 = vld [vmem:[%s735 + $0xe0] sm:$0xff]
    %v765 = vld [vmem:[%s735 + $0xe8] sm:$0xff]
    %v766 = vld [vmem:[%s735 + $0xf0] sm:$0xff]
    %v767 = vld [vmem:[%s735 + $0xf8] sm:$0xff]
    %v768 = vld [vmem:[%s735 + $0x100] sm:$0xff]
    %v769 = vld [vmem:[%s735 + $0x108] sm:$0xff]
    %v770 = vld [vmem:[%s735 + $0x110] sm:$0xff]
    %v771 = vld [vmem:[%s735 + $0x118] sm:$0xff]
    %v772 = vld [vmem:[%s735 + $0x120] sm:$0xff]
    %v773 = vld [vmem:[%s735 + $0x128] sm:$0xff]
    %v774 = vld [vmem:[%s735 + $0x130] sm:$0xff]
    %v775 = vld [vmem:[%s735 + $0x138] sm:$0xff]
    %v776 = vld [vmem:[%s735 + $0x140] sm:$0xff]
    %v777 = vld [vmem:[%s735 + $0x148] sm:$0xff]
    %v778 = vld [vmem:[%s735 + $0x150] sm:$0xff]
    %v779 = vld [vmem:[%s735 + $0x158] sm:$0xff]
    %v780 = vld [vmem:[%s735 + $0x160] sm:$0xff]
    %v781 = vld [vmem:[%s735 + $0x168] sm:$0xff]
    %v782 = vld [vmem:[%s735 + $0x170] sm:$0xff]
    %v783 = vld [vmem:[%s735 + $0x178] sm:$0xff]
    %784 = vmatprep.subr.mxu0 %v737
    %785 = vmatpush1.msra.mxu0 %v736
    %786 = vmatprep.subr.mxu0 %v740
    %787 = vmatpush1.msra.mxu0 %v739
    %788 = vmatprep.subr.mxu0 %v743
    %789 = vmatpush1.msra.mxu0 %v742
    %790 = vmatprep.subr.mxu0 %v746
    %791 = vmatpush1.msra.mxu0 %v745
    %792 = vmatprep.subr.mxu0 %v749
    %793 = vmatpush1.msra.mxu0 %v748
    %794 = vmatprep.subr.mxu0 %v752
    %795 = vmatpush1.msra.mxu0 %v751
    %796 = vmatprep.subr.mxu0 %v755
    %797 = vmatpush1.msra.mxu0 %v754
    %798 = vmatprep.subr.mxu0 %v758
    %799 = vmatpush1.msra.mxu0 %v757
    %800 = vmatprep.subr.mxu0 %v761
    %801 = vmatpush1.msra.mxu0 %v760
    %802 = vmatprep.subr.mxu0 %v764
    %803 = vmatpush1.msra.mxu0 %v763
    %804 = vmatprep.subr.mxu0 %v767
    %805 = vmatpush1.msra.mxu0 %v766
    %806 = vmatprep.subr.mxu0 %v770
    %807 = vmatpush1.msra.mxu0 %v769
    %808 = vmatprep.subr.mxu0 %v773
    %809 = vmatpush1.msra.mxu0 %v772
    %810 = vmatprep.subr.mxu0 %v776
    %811 = vmatpush1.msra.mxu0 %v775
    %812 = vmatprep.subr.mxu0 %v779
    %813 = vmatpush1.msra.mxu0 %v778
    %814 = vmatprep.subr.mxu0 %v782
    %815 = vmatpush1.msra.mxu0 %v781
    %816 = vmatprep.subr.mxu0 0.0
    %817 = vmatpush1.msra.mxu0 0.0
    %818 = vmatprep.subr.mxu0 0.0
    %819 = vmatpush1.msra.mxu0 0.0
    %820 = vmatprep.subr.mxu0 0.0
    %821 = vmatpush1.msra.mxu0 0.0
    %822 = vmatprep.subr.mxu0 0.0
    %823 = vmatpush1.msra.mxu0 0.0
    %824 = vmatprep.subr.mxu0 0.0
    %825 = vmatpush1.msra.mxu0 0.0
    %826 = vmatprep.subr.mxu0 0.0
    %827 = vmatpush1.msra.mxu0 0.0
    %828 = vmatprep.subr.mxu0 0.0
    %829 = vmatpush1.msra.mxu0 0.0
    %830 = vmatprep.subr.mxu0 0.0
    %831 = vmatpush1.msra.mxu0 0.0
    %832 = vmatprep.subr.mxu0 0.0
    %833 = vmatpush1.msra.mxu0 0.0
    %834 = vmatprep.subr.mxu0 0.0
    %835 = vmatpush1.msra.mxu0 0.0
    %836 = vmatprep.subr.mxu0 0.0
    %837 = vmatpush1.msra.mxu0 0.0
    %838 = vmatprep.subr.mxu0 0.0
    %839 = vmatpush1.msra.mxu0 0.0
    %840 = vmatprep.subr.mxu0 0.0
    %841 = vmatpush1.msra.mxu0 0.0
    %842 = vmatprep.subr.mxu0 0.0
    %843 = vmatpush1.msra.mxu0 0.0
    %844 = vmatprep.subr.mxu0 0.0
    %845 = vmatpush1.msra.mxu0 0.0
    %846 = vmatprep.subr.mxu0 0.0
    %847 = vmatpush1.msra.mxu0 0.0
    %848 = vmatprep.mubr.f32.mxu0 0.0
    %849 = vmatmul.mubr.f32.gmra.mrb[0].mxu0 %v526
    %v850 = vpop.f32.mrb[0].mxu0
    %v851 = vadd.f32 0.0, %v850
    %v852 = vpop.f32.mrb[0].mxu0
    %v853 = vadd.f32 0.0, %v852
    %854 = vdwg.mxu0
    %855 = vmatprep.subr.mxu0 0.0
    %856 = vmatpush1.msra.mxu0 %v738
    %857 = vmatprep.subr.mxu0 0.0
    %858 = vmatpush1.msra.mxu0 %v741
    %859 = vmatprep.subr.mxu0 0.0
    %860 = vmatpush1.msra.mxu0 %v744
    %861 = vmatprep.subr.mxu0 0.0
    %862 = vmatpush1.msra.mxu0 %v747
    %863 = vmatprep.subr.mxu0 0.0
    %864 = vmatpush1.msra.mxu0 %v750
    %865 = vmatprep.subr.mxu0 0.0
    %866 = vmatpush1.msra.mxu0 %v753
    %867 = vmatprep.subr.mxu0 0.0
    %868 = vmatpush1.msra.mxu0 %v756
    %869 = vmatprep.subr.mxu0 0.0
    %870 = vmatpush1.msra.mxu0 %v759
    %871 = vmatprep.subr.mxu0 0.0
    %872 = vmatpush1.msra.mxu0 %v762
    %873 = vmatprep.subr.mxu0 0.0
    %874 = vmatpush1.msra.mxu0 %v765
    %875 = vmatprep.subr.mxu0 0.0
    %876 = vmatpush1.msra.mxu0 %v768
    %877 = vmatprep.subr.mxu0 0.0
    %878 = vmatpush1.msra.mxu0 %v771
    %879 = vmatprep.subr.mxu0 0.0
    %880 = vmatpush1.msra.mxu0 %v774
    %881 = vmatprep.subr.mxu0 0.0
    %882 = vmatpush1.msra.mxu0 %v777
    %883 = vmatprep.subr.mxu0 0.0
    %884 = vmatpush1.msra.mxu0 %v780
    %885 = vmatprep.subr.mxu0 0.0
    %886 = vmatpush1.msra.mxu0 %v783
    %887 = vmatprep.subr.mxu0 0.0
    %888 = vmatpush1.msra.mxu0 0.0
    %889 = vmatprep.subr.mxu0 0.0
    %890 = vmatpush1.msra.mxu0 0.0
    %891 = vmatprep.subr.mxu0 0.0
    %892 = vmatpush1.msra.mxu0 0.0
    %893 = vmatprep.subr.mxu0 0.0
    %894 = vmatpush1.msra.mxu0 0.0
    %895 = vmatprep.subr.mxu0 0.0
    %896 = vmatpush1.msra.mxu0 0.0
    %897 = vmatprep.subr.mxu0 0.0
    %898 = vmatpush1.msra.mxu0 0.0
    %899 = vmatprep.subr.mxu0 0.0
    %900 = vmatpush1.msra.mxu0 0.0
    %901 = vmatprep.subr.mxu0 0.0
    %902 = vmatpush1.msra.mxu0 0.0
    %903 = vmatprep.subr.mxu0 0.0
    %904 = vmatpush1.msra.mxu0 0.0
    %905 = vmatprep.subr.mxu0 0.0
    %906 = vmatpush1.msra.mxu0 0.0
    %907 = vmatprep.subr.mxu0 0.0
    %908 = vmatpush1.msra.mxu0 0.0
    %909 = vmatprep.subr.mxu0 0.0
    %910 = vmatpush1.msra.mxu0 0.0
    %911 = vmatprep.subr.mxu0 0.0
    %912 = vmatpush1.msra.mxu0 0.0
    %913 = vmatprep.subr.mxu0 0.0
    %914 = vmatpush1.msra.mxu0 0.0
    %915 = vmatprep.subr.mxu0 0.0
    %916 = vmatpush1.msra.mxu0 0.0
    %917 = vmatprep.subr.mxu0 0.0
    %918 = vmatpush1.msra.mxu0 0.0
    %919 = vmatprep.mubr.f32.mxu0 0.0
    %920 = vmatmul.mubr.f32.gmra.mrb[0].mxu0 %v526
    %v921 = vpop.f32.mrb[0].mxu0
    %v922 = vadd.f32 0.0, %v921
    %v923 = vpop.f32.mrb[0].mxu0
    %924 = vdwg.mxu0
    %v925 = vadd.f32 %v661, %v851
    %v926 = vxor.u32 %v925, 2147483648
    %v927 = vmul.f32 %v926, 1.442695
    %v928 = vpow.pop %v927
    %v929 = vadd.f32 %v928, 1.0
    %v930 = vrcp.pop %v929
    %v931 = vmul.f32 1.0, %v930
    %v932 = vadd.f32 %v663, %v853
    %v933 = vxor.u32 %v932, 2147483648
    %v934 = vmul.f32 %v933, 1.442695
    %v935 = vpow.pop %v934
    %v936 = vadd.f32 %v935, 1.0
    %v937 = vrcp.pop %v936
    %v938 = vmul.f32 1.0, %v937
    %s939 = scalar_lea.vmem %s6, 1
    %v940 = vld [vmem:[%s939] sm:$0x1]
    %v942 = vlaneseq
    %v943 = vshrl.u32 %v942, 7
    %v944 = vsub.s32 0, %v943
    %v945 = vrot.slane %v940, %v944
    %v947 = vadd.f32 %v922, %v945
    %v948 = vmul.f32 %v931, %v947
    %v949 = vadd.f32 %v732, %v948
    %v950 = vtanh.pop %v949
    %v951 = vsub.f32 1.0, %v938
    %v952 = vmul.f32 %v951, %v950
    %v953 = vmul.f32 %v938, %v526
    %v954 = vadd.f32 %v952, %v953
    %s955 = scalar_lea.vmem %s13, 8
    %956 = vst [vmem:[%s955] sm:$0xff] %v954
    %v957 = vld [vmem:[%s2] sm:$0xff]
    %v958 = vld [vmem:[%s2 + $0x8] sm:$0xff]
    %v959 = vld [vmem:[%s2 + $0x10] sm:$0xff]
    %v960 = vld [vmem:[%s2 + $0x18] sm:$0xff]
    %v961 = vld [vmem:[%s2 + $0x20] sm:$0xff]
    %v962 = vld [vmem:[%s2 + $0x28] sm:$0xff]
    %v963 = vld [vmem:[%s2 + $0x30] sm:$0xff]
    %v964 = vld [vmem:[%s2 + $0x38] sm:$0xff]
    %v966 = vcombine.high %v954, %v954
    %v968 = vunpack.c.l.s4 1966171168
    %v969 = vunpack.c.0.s8 %v968
    %v970 = vlaneseq
    %v971 = vshrl.u32 %v970, 7
    %v972 = vsub.s32 %v969, %v971
    %v973 = vrot.slane %v954, %v972
    %v975 = vunpack.c.l.s4 1966171168
    %v976 = vunpack.c.0.s8 %v975
    %v977 = vlaneseq
    %v978 = vshrl.u32 %v977, 7
    %v979 = vsub.s32 %v976, %v978
    %v980 = vrot.slane %v966, %v979
    %v981 = vcombine.high %v973, %v973
    %v982 = vcombine.high %v980, %v980
    %v984 = vunpack.c.l.s4 1966171168
    %v985 = vunpack.c.0.s8 %v984
    %v986 = vlaneseq
    %v987 = vshrl.u32 %v986, 7
    %v988 = vsub.s32 %v985, %v987
    %v989 = vrot.slane %v973, %v988
    %v991 = vunpack.c.l.s4 1966171168
    %v992 = vunpack.c.0.s8 %v991
    %v993 = vlaneseq
    %v994 = vshrl.u32 %v993, 7
    %v995 = vsub.s32 %v992, %v994
    %v996 = vrot.slane %v980, %v995
    %v998 = vunpack.c.l.s4 1966171168
    %v999 = vunpack.c.0.s8 %v998
    %v1000 = vlaneseq
    %v1001 = vshrl.u32 %v1000, 7
    %v1002 = vsub.s32 %v999, %v1001
    %v1003 = vrot.slane %v981, %v1002
    %v1005 = vunpack.c.l.s4 1966171168
    %v1006 = vunpack.c.0.s8 %v1005
    %v1007 = vlaneseq
    %v1008 = vshrl.u32 %v1007, 7
    %v1009 = vsub.s32 %v1006, %v1008
    %v1010 = vrot.slane %v982, %v1009
    %v1011 = vcombine.high %v989, %v989
    %v1012 = vcombine.high %v996, %v996
    %v1013 = vcombine.high %v1003, %v1003
    %v1014 = vcombine.high %v1010, %v1010
    %1023 = vmatprep.subr.mxu0 0.0
    %1024 = vmatpush1.xpose.msra.mxu0 %v957
    %1025 = vmatprep.subr.mxu0 0.0
    %1026 = vmatpush1.xpose.msra.mxu0 0.0
    %1027 = vmatprep.subr.mxu0 0.0
    %1028 = vmatpush1.xpose.msra.mxu0 0.0
    %1029 = vmatprep.subr.mxu0 0.0
    %1030 = vmatpush1.xpose.msra.mxu0 0.0
    %1031 = vmatprep.subr.mxu0 0.0
    %1032 = vmatpush1.xpose.msra.mxu0 0.0
    %1033 = vmatprep.subr.mxu0 0.0
    %1034 = vmatpush1.xpose.msra.mxu0 0.0
    %1035 = vmatprep.subr.mxu0 0.0
    %1036 = vmatpush1.xpose.msra.mxu0 0.0
    %1037 = vmatprep.subr.mxu0 0.0
    %1038 = vmatpush1.xpose.msra.mxu0 0.0
    %1039 = vmatprep.subr.mxu0 0.0
    %1040 = vmatpush1.xpose.msra.mxu0 0.0
    %1041 = vmatprep.subr.mxu0 0.0
    %1042 = vmatpush1.xpose.msra.mxu0 0.0
    %1043 = vmatprep.subr.mxu0 0.0
    %1044 = vmatpush1.xpose.msra.mxu0 0.0
    %1045 = vmatprep.subr.mxu0 0.0
    %1046 = vmatpush1.xpose.msra.mxu0 0.0
    %1047 = vmatprep.subr.mxu0 0.0
    %1048 = vmatpush1.xpose.msra.mxu0 0.0
    %1049 = vmatprep.subr.mxu0 0.0
    %1050 = vmatpush1.xpose.msra.mxu0 0.0
    %1051 = vmatprep.subr.mxu0 0.0
    %1052 = vmatpush1.xpose.msra.mxu0 0.0
    %1053 = vmatprep.subr.mxu0 0.0
    %1054 = vmatpush1.xpose.msra.mxu0 0.0
    %1055 = vmatprep.subr.mxu0 0.0
    %1056 = vmatpush1.xpose.msra.mxu0 0.0
    %1057 = vmatprep.subr.mxu0 0.0
    %1058 = vmatpush1.xpose.msra.mxu0 0.0
    %1059 = vmatprep.subr.mxu0 0.0
    %1060 = vmatpush1.xpose.msra.mxu0 0.0
    %1061 = vmatprep.subr.mxu0 0.0
    %1062 = vmatpush1.xpose.msra.mxu0 0.0
    %1063 = vmatprep.subr.mxu0 0.0
    %1064 = vmatpush1.xpose.msra.mxu0 0.0
    %1065 = vmatprep.subr.mxu0 0.0
    %1066 = vmatpush1.xpose.msra.mxu0 0.0
    %1067 = vmatprep.subr.mxu0 0.0
    %1068 = vmatpush1.xpose.msra.mxu0 0.0
    %1069 = vmatprep.subr.mxu0 0.0
    %1070 = vmatpush1.xpose.msra.mxu0 0.0
    %1071 = vmatprep.subr.mxu0 0.0
    %1072 = vmatpush1.xpose.msra.mxu0 0.0
    %1073 = vmatprep.subr.mxu0 0.0
    %1074 = vmatpush1.xpose.msra.mxu0 0.0
    %1075 = vmatprep.subr.mxu0 0.0
    %1076 = vmatpush1.xpose.msra.mxu0 0.0
    %1077 = vmatprep.subr.mxu0 0.0
    %1078 = vmatpush1.xpose.msra.mxu0 0.0
    %1079 = vmatprep.subr.mxu0 0.0
    %1080 = vmatpush1.xpose.msra.mxu0 0.0
    %1081 = vmatprep.subr.mxu0 0.0
    %1082 = vmatpush1.xpose.msra.mxu0 0.0
    %1083 = vmatprep.subr.mxu0 0.0
    %1084 = vmatpush1.xpose.msra.mxu0 0.0
    %1085 = vmatprep.subr.mxu0 0.0
    %1086 = vmatpush1.xpose.msra.mxu0 0.0
    %1087 = vmatprep.mubr.f32.mxu0 0.0
    %1088 = vmatmul.mubr.f32.gmra.mrb[0].mxu0 %v989
    %v1089 = vpop.f32.mrb[0].mxu0
    %v1090 = vadd.f32 0.0, %v1089
    %v1091 = vpop.f32.mrb[0].mxu0
    %1092 = vdwg.mxu0
    %1093 = vmatprep.subr.mxu0 0.0
    %1094 = vmatpush1.xpose.msra.mxu0 %v958
    %1095 = vmatprep.subr.mxu0 0.0
    %1096 = vmatpush1.xpose.msra.mxu0 0.0
    %1097 = vmatprep.subr.mxu0 0.0
    %1098 = vmatpush1.xpose.msra.mxu0 0.0
    %1099 = vmatprep.subr.mxu0 0.0
    %1100 = vmatpush1.xpose.msra.mxu0 0.0
    %1101 = vmatprep.subr.mxu0 0.0
    %1102 = vmatpush1.xpose.msra.mxu0 0.0
    %1103 = vmatprep.subr.mxu0 0.0
    %1104 = vmatpush1.xpose.msra.mxu0 0.0
    %1105 = vmatprep.subr.mxu0 0.0
    %1106 = vmatpush1.xpose.msra.mxu0 0.0
    %1107 = vmatprep.subr.mxu0 0.0
    %1108 = vmatpush1.xpose.msra.mxu0 0.0
    %1109 = vmatprep.subr.mxu0 0.0
    %1110 = vmatpush1.xpose.msra.mxu0 0.0
    %1111 = vmatprep.subr.mxu0 0.0
    %1112 = vmatpush1.xpose.msra.mxu0 0.0
    %1113 = vmatprep.subr.mxu0 0.0
    %1114 = vmatpush1.xpose.msra.mxu0 0.0
    %1115 = vmatprep.subr.mxu0 0.0
    %1116 = vmatpush1.xpose.msra.mxu0 0.0
    %1117 = vmatprep.subr.mxu0 0.0
    %1118 = vmatpush1.xpose.msra.mxu0 0.0
    %1119 = vmatprep.subr.mxu0 0.0
    %1120 = vmatpush1.xpose.msra.mxu0 0.0
    %1121 = vmatprep.subr.mxu0 0.0
    %1122 = vmatpush1.xpose.msra.mxu0 0.0
    %1123 = vmatprep.subr.mxu0 0.0
    %1124 = vmatpush1.xpose.msra.mxu0 0.0
    %1125 = vmatprep.subr.mxu0 0.0
    %1126 = vmatpush1.xpose.msra.mxu0 0.0
    %1127 = vmatprep.subr.mxu0 0.0
    %1128 = vmatpush1.xpose.msra.mxu0 0.0
    %1129 = vmatprep.subr.mxu0 0.0
    %1130 = vmatpush1.xpose.msra.mxu0 0.0
    %1131 = vmatprep.subr.mxu0 0.0
    %1132 = vmatpush1.xpose.msra.mxu0 0.0
    %1133 = vmatprep.subr.mxu0 0.0
    %1134 = vmatpush1.xpose.msra.mxu0 0.0
    %1135 = vmatprep.subr.mxu0 0.0
    %1136 = vmatpush1.xpose.msra.mxu0 0.0
    %1137 = vmatprep.subr.mxu0 0.0
    %1138 = vmatpush1.xpose.msra.mxu0 0.0
    %1139 = vmatprep.subr.mxu0 0.0
    %1140 = vmatpush1.xpose.msra.mxu0 0.0
    %1141 = vmatprep.subr.mxu0 0.0
    %1142 = vmatpush1.xpose.msra.mxu0 0.0
    %1143 = vmatprep.subr.mxu0 0.0
    %1144 = vmatpush1.xpose.msra.mxu0 0.0
    %1145 = vmatprep.subr.mxu0 0.0
    %1146 = vmatpush1.xpose.msra.mxu0 0.0
    %1147 = vmatprep.subr.mxu0 0.0
    %1148 = vmatpush1.xpose.msra.mxu0 0.0
    %1149 = vmatprep.subr.mxu0 0.0
    %1150 = vmatpush1.xpose.msra.mxu0 0.0
    %1151 = vmatprep.subr.mxu0 0.0
    %1152 = vmatpush1.xpose.msra.mxu0 0.0
    %1153 = vmatprep.subr.mxu0 0.0
    %1154 = vmatpush1.xpose.msra.mxu0 0.0
    %1155 = vmatprep.subr.mxu0 0.0
    %1156 = vmatpush1.xpose.msra.mxu0 0.0
    %1157 = vmatprep.mubr.f32.mxu0 0.0
    %1158 = vmatmul.mubr.f32.gmra.mrb[0].mxu0 %v1003
    %v1159 = vpop.f32.mrb[0].mxu0
    %v1160 = vadd.f32 0.0, %v1159
    %v1161 = vpop.f32.mrb[0].mxu0
    %1162 = vdwg.mxu0
    %1163 = vmatprep.subr.mxu0 0.0
    %1164 = vmatpush1.xpose.msra.mxu0 %v959
    %1165 = vmatprep.subr.mxu0 0.0
    %1166 = vmatpush1.xpose.msra.mxu0 0.0
    %1167 = vmatprep.subr.mxu0 0.0
    %1168 = vmatpush1.xpose.msra.mxu0 0.0
    %1169 = vmatprep.subr.mxu0 0.0
    %1170 = vmatpush1.xpose.msra.mxu0 0.0
    %1171 = vmatprep.subr.mxu0 0.0
    %1172 = vmatpush1.xpose.msra.mxu0 0.0
    %1173 = vmatprep.subr.mxu0 0.0
    %1174 = vmatpush1.xpose.msra.mxu0 0.0
    %1175 = vmatprep.subr.mxu0 0.0
    %1176 = vmatpush1.xpose.msra.mxu0 0.0
    %1177 = vmatprep.subr.mxu0 0.0
    %1178 = vmatpush1.xpose.msra.mxu0 0.0
    %1179 = vmatprep.subr.mxu0 0.0
    %1180 = vmatpush1.xpose.msra.mxu0 0.0
    %1181 = vmatprep.subr.mxu0 0.0
    %1182 = vmatpush1.xpose.msra.mxu0 0.0
    %1183 = vmatprep.subr.mxu0 0.0
    %1184 = vmatpush1.xpose.msra.mxu0 0.0
    %1185 = vmatprep.subr.mxu0 0.0
    %1186 = vmatpush1.xpose.msra.mxu0 0.0
    %1187 = vmatprep.subr.mxu0 0.0
    %1188 = vmatpush1.xpose.msra.mxu0 0.0
    %1189 = vmatprep.subr.mxu0 0.0
    %1190 = vmatpush1.xpose.msra.mxu0 0.0
    %1191 = vmatprep.subr.mxu0 0.0
    %1192 = vmatpush1.xpose.msra.mxu0 0.0
    %1193 = vmatprep.subr.mxu0 0.0
    %1194 = vmatpush1.xpose.msra.mxu0 0.0
    %1195 = vmatprep.subr.mxu0 0.0
    %1196 = vmatpush1.xpose.msra.mxu0 0.0
    %1197 = vmatprep.subr.mxu0 0.0
    %1198 = vmatpush1.xpose.msra.mxu0 0.0
    %1199 = vmatprep.subr.mxu0 0.0
    %1200 = vmatpush1.xpose.msra.mxu0 0.0
    %1201 = vmatprep.subr.mxu0 0.0
    %1202 = vmatpush1.xpose.msra.mxu0 0.0
    %1203 = vmatprep.subr.mxu0 0.0
    %1204 = vmatpush1.xpose.msra.mxu0 0.0
    %1205 = vmatprep.subr.mxu0 0.0
    %1206 = vmatpush1.xpose.msra.mxu0 0.0
    %1207 = vmatprep.subr.mxu0 0.0
    %1208 = vmatpush1.xpose.msra.mxu0 0.0
    %1209 = vmatprep.subr.mxu0 0.0
    %1210 = vmatpush1.xpose.msra.mxu0 0.0
    %1211 = vmatprep.subr.mxu0 0.0
    %1212 = vmatpush1.xpose.msra.mxu0 0.0
    %1213 = vmatprep.subr.mxu0 0.0
    %1214 = vmatpush1.xpose.msra.mxu0 0.0
    %1215 = vmatprep.subr.mxu0 0.0
    %1216 = vmatpush1.xpose.msra.mxu0 0.0
    %1217 = vmatprep.subr.mxu0 0.0
    %1218 = vmatpush1.xpose.msra.mxu0 0.0
    %1219 = vmatprep.subr.mxu0 0.0
    %1220 = vmatpush1.xpose.msra.mxu0 0.0
    %1221 = vmatprep.subr.mxu0 0.0
    %1222 = vmatpush1.xpose.msra.mxu0 0.0
    %1223 = vmatprep.subr.mxu0 0.0
    %1224 = vmatpush1.xpose.msra.mxu0 0.0
    %1225 = vmatprep.subr.mxu0 0.0
    %1226 = vmatpush1.xpose.msra.mxu0 0.0
    %1227 = vmatprep.mubr.f32.mxu0 0.0
    %1228 = vmatmul.mubr.f32.gmra.mrb[0].mxu0 %v1011
    %v1229 = vpop.f32.mrb[0].mxu0
    %v1230 = vadd.f32 0.0, %v1229
    %v1231 = vpop.f32.mrb[0].mxu0
    %1232 = vdwg.mxu0
    %1233 = vmatprep.subr.mxu0 0.0
    %1234 = vmatpush1.xpose.msra.mxu0 %v960
    %1235 = vmatprep.subr.mxu0 0.0
    %1236 = vmatpush1.xpose.msra.mxu0 0.0
    %1237 = vmatprep.subr.mxu0 0.0
    %1238 = vmatpush1.xpose.msra.mxu0 0.0
    %1239 = vmatprep.subr.mxu0 0.0
    %1240 = vmatpush1.xpose.msra.mxu0 0.0
    %1241 = vmatprep.subr.mxu0 0.0
    %1242 = vmatpush1.xpose.msra.mxu0 0.0
    %1243 = vmatprep.subr.mxu0 0.0
    %1244 = vmatpush1.xpose.msra.mxu0 0.0
    %1245 = vmatprep.subr.mxu0 0.0
    %1246 = vmatpush1.xpose.msra.mxu0 0.0
    %1247 = vmatprep.subr.mxu0 0.0
    %1248 = vmatpush1.xpose.msra.mxu0 0.0
    %1249 = vmatprep.subr.mxu0 0.0
    %1250 = vmatpush1.xpose.msra.mxu0 0.0
    %1251 = vmatprep.subr.mxu0 0.0
    %1252 = vmatpush1.xpose.msra.mxu0 0.0
    %1253 = vmatprep.subr.mxu0 0.0
    %1254 = vmatpush1.xpose.msra.mxu0 0.0
    %1255 = vmatprep.subr.mxu0 0.0
    %1256 = vmatpush1.xpose.msra.mxu0 0.0
    %1257 = vmatprep.subr.mxu0 0.0
    %1258 = vmatpush1.xpose.msra.mxu0 0.0
    %1259 = vmatprep.subr.mxu0 0.0
    %1260 = vmatpush1.xpose.msra.mxu0 0.0
    %1261 = vmatprep.subr.mxu0 0.0
    %1262 = vmatpush1.xpose.msra.mxu0 0.0
    %1263 = vmatprep.subr.mxu0 0.0
    %1264 = vmatpush1.xpose.msra.mxu0 0.0
    %1265 = vmatprep.subr.mxu0 0.0
    %1266 = vmatpush1.xpose.msra.mxu0 0.0
    %1267 = vmatprep.subr.mxu0 0.0
    %1268 = vmatpush1.xpose.msra.mxu0 0.0
    %1269 = vmatprep.subr.mxu0 0.0
    %1270 = vmatpush1.xpose.msra.mxu0 0.0
    %1271 = vmatprep.subr.mxu0 0.0
    %1272 = vmatpush1.xpose.msra.mxu0 0.0
    %1273 = vmatprep.subr.mxu0 0.0
    %1274 = vmatpush1.xpose.msra.mxu0 0.0
    %1275 = vmatprep.subr.mxu0 0.0
    %1276 = vmatpush1.xpose.msra.mxu0 0.0
    %1277 = vmatprep.subr.mxu0 0.0
    %1278 = vmatpush1.xpose.msra.mxu0 0.0
    %1279 = vmatprep.subr.mxu0 0.0
    %1280 = vmatpush1.xpose.msra.mxu0 0.0
    %1281 = vmatprep.subr.mxu0 0.0
    %1282 = vmatpush1.xpose.msra.mxu0 0.0
    %1283 = vmatprep.subr.mxu0 0.0
    %1284 = vmatpush1.xpose.msra.mxu0 0.0
    %1285 = vmatprep.subr.mxu0 0.0
    %1286 = vmatpush1.xpose.msra.mxu0 0.0
    %1287 = vmatprep.subr.mxu0 0.0
    %1288 = vmatpush1.xpose.msra.mxu0 0.0
    %1289 = vmatprep.subr.mxu0 0.0
    %1290 = vmatpush1.xpose.msra.mxu0 0.0
    %1291 = vmatprep.subr.mxu0 0.0
    %1292 = vmatpush1.xpose.msra.mxu0 0.0
    %1293 = vmatprep.subr.mxu0 0.0
    %1294 = vmatpush1.xpose.msra.mxu0 0.0
    %1295 = vmatprep.subr.mxu0 0.0
    %1296 = vmatpush1.xpose.msra.mxu0 0.0
    %1297 = vmatprep.mubr.f32.mxu0 0.0
    %1298 = vmatmul.mubr.f32.gmra.mrb[0].mxu0 %v1013
    %v1299 = vpop.f32.mrb[0].mxu0
    %v1300 = vadd.f32 0.0, %v1299
    %v1301 = vpop.f32.mrb[0].mxu0
    %1302 = vdwg.mxu0
    %1303 = vmatprep.subr.mxu0 0.0
    %1304 = vmatpush1.xpose.msra.mxu0 %v961
    %1305 = vmatprep.subr.mxu0 0.0
    %1306 = vmatpush1.xpose.msra.mxu0 0.0
    %1307 = vmatprep.subr.mxu0 0.0
    %1308 = vmatpush1.xpose.msra.mxu0 0.0
    %1309 = vmatprep.subr.mxu0 0.0
    %1310 = vmatpush1.xpose.msra.mxu0 0.0
    %1311 = vmatprep.subr.mxu0 0.0
    %1312 = vmatpush1.xpose.msra.mxu0 0.0
    %1313 = vmatprep.subr.mxu0 0.0
    %1314 = vmatpush1.xpose.msra.mxu0 0.0
    %1315 = vmatprep.subr.mxu0 0.0
    %1316 = vmatpush1.xpose.msra.mxu0 0.0
    %1317 = vmatprep.subr.mxu0 0.0
    %1318 = vmatpush1.xpose.msra.mxu0 0.0
    %1319 = vmatprep.subr.mxu0 0.0
    %1320 = vmatpush1.xpose.msra.mxu0 0.0
    %1321 = vmatprep.subr.mxu0 0.0
    %1322 = vmatpush1.xpose.msra.mxu0 0.0
    %1323 = vmatprep.subr.mxu0 0.0
    %1324 = vmatpush1.xpose.msra.mxu0 0.0
    %1325 = vmatprep.subr.mxu0 0.0
    %1326 = vmatpush1.xpose.msra.mxu0 0.0
    %1327 = vmatprep.subr.mxu0 0.0
    %1328 = vmatpush1.xpose.msra.mxu0 0.0
    %1329 = vmatprep.subr.mxu0 0.0
    %1330 = vmatpush1.xpose.msra.mxu0 0.0
    %1331 = vmatprep.subr.mxu0 0.0
    %1332 = vmatpush1.xpose.msra.mxu0 0.0
    %1333 = vmatprep.subr.mxu0 0.0
    %1334 = vmatpush1.xpose.msra.mxu0 0.0
    %1335 = vmatprep.subr.mxu0 0.0
    %1336 = vmatpush1.xpose.msra.mxu0 0.0
    %1337 = vmatprep.subr.mxu0 0.0
    %1338 = vmatpush1.xpose.msra.mxu0 0.0
    %1339 = vmatprep.subr.mxu0 0.0
    %1340 = vmatpush1.xpose.msra.mxu0 0.0
    %1341 = vmatprep.subr.mxu0 0.0
    %1342 = vmatpush1.xpose.msra.mxu0 0.0
    %1343 = vmatprep.subr.mxu0 0.0
    %1344 = vmatpush1.xpose.msra.mxu0 0.0
    %1345 = vmatprep.subr.mxu0 0.0
    %1346 = vmatpush1.xpose.msra.mxu0 0.0
    %1347 = vmatprep.subr.mxu0 0.0
    %1348 = vmatpush1.xpose.msra.mxu0 0.0
    %1349 = vmatprep.subr.mxu0 0.0
    %1350 = vmatpush1.xpose.msra.mxu0 0.0
    %1351 = vmatprep.subr.mxu0 0.0
    %1352 = vmatpush1.xpose.msra.mxu0 0.0
    %1353 = vmatprep.subr.mxu0 0.0
    %1354 = vmatpush1.xpose.msra.mxu0 0.0
    %1355 = vmatprep.subr.mxu0 0.0
    %1356 = vmatpush1.xpose.msra.mxu0 0.0
    %1357 = vmatprep.subr.mxu0 0.0
    %1358 = vmatpush1.xpose.msra.mxu0 0.0
    %1359 = vmatprep.subr.mxu0 0.0
    %1360 = vmatpush1.xpose.msra.mxu0 0.0
    %1361 = vmatprep.subr.mxu0 0.0
    %1362 = vmatpush1.xpose.msra.mxu0 0.0
    %1363 = vmatprep.subr.mxu0 0.0
    %1364 = vmatpush1.xpose.msra.mxu0 0.0
    %1365 = vmatprep.subr.mxu0 0.0
    %1366 = vmatpush1.xpose.msra.mxu0 0.0
    %1367 = vmatprep.mubr.f32.mxu0 0.0
    %1368 = vmatmul.mubr.f32.gmra.mrb[0].mxu0 %v996
    %v1369 = vpop.f32.mrb[0].mxu0
    %v1370 = vadd.f32 0.0, %v1369
    %v1371 = vpop.f32.mrb[0].mxu0
    %1372 = vdwg.mxu0
    %1373 = vmatprep.subr.mxu0 0.0
    %1374 = vmatpush1.xpose.msra.mxu0 %v962
    %1375 = vmatprep.subr.mxu0 0.0
    %1376 = vmatpush1.xpose.msra.mxu0 0.0
    %1377 = vmatprep.subr.mxu0 0.0
    %1378 = vmatpush1.xpose.msra.mxu0 0.0
    %1379 = vmatprep.subr.mxu0 0.0
    %1380 = vmatpush1.xpose.msra.mxu0 0.0
    %1381 = vmatprep.subr.mxu0 0.0
    %1382 = vmatpush1.xpose.msra.mxu0 0.0
    %1383 = vmatprep.subr.mxu0 0.0
    %1384 = vmatpush1.xpose.msra.mxu0 0.0
    %1385 = vmatprep.subr.mxu0 0.0
    %1386 = vmatpush1.xpose.msra.mxu0 0.0
    %1387 = vmatprep.subr.mxu0 0.0
    %1388 = vmatpush1.xpose.msra.mxu0 0.0
    %1389 = vmatprep.subr.mxu0 0.0
    %1390 = vmatpush1.xpose.msra.mxu0 0.0
    %1391 = vmatprep.subr.mxu0 0.0
    %1392 = vmatpush1.xpose.msra.mxu0 0.0
    %1393 = vmatprep.subr.mxu0 0.0
    %1394 = vmatpush1.xpose.msra.mxu0 0.0
    %1395 = vmatprep.subr.mxu0 0.0
    %1396 = vmatpush1.xpose.msra.mxu0 0.0
    %1397 = vmatprep.subr.mxu0 0.0
    %1398 = vmatpush1.xpose.msra.mxu0 0.0
    %1399 = vmatprep.subr.mxu0 0.0
    %1400 = vmatpush1.xpose.msra.mxu0 0.0
    %1401 = vmatprep.subr.mxu0 0.0
    %1402 = vmatpush1.xpose.msra.mxu0 0.0
    %1403 = vmatprep.subr.mxu0 0.0
    %1404 = vmatpush1.xpose.msra.mxu0 0.0
    %1405 = vmatprep.subr.mxu0 0.0
    %1406 = vmatpush1.xpose.msra.mxu0 0.0
    %1407 = vmatprep.subr.mxu0 0.0
    %1408 = vmatpush1.xpose.msra.mxu0 0.0
    %1409 = vmatprep.subr.mxu0 0.0
    %1410 = vmatpush1.xpose.msra.mxu0 0.0
    %1411 = vmatprep.subr.mxu0 0.0
    %1412 = vmatpush1.xpose.msra.mxu0 0.0
    %1413 = vmatprep.subr.mxu0 0.0
    %1414 = vmatpush1.xpose.msra.mxu0 0.0
    %1415 = vmatprep.subr.mxu0 0.0
    %1416 = vmatpush1.xpose.msra.mxu0 0.0
    %1417 = vmatprep.subr.mxu0 0.0
    %1418 = vmatpush1.xpose.msra.mxu0 0.0
    %1419 = vmatprep.subr.mxu0 0.0
    %1420 = vmatpush1.xpose.msra.mxu0 0.0
    %1421 = vmatprep.subr.mxu0 0.0
    %1422 = vmatpush1.xpose.msra.mxu0 0.0
    %1423 = vmatprep.subr.mxu0 0.0
    %1424 = vmatpush1.xpose.msra.mxu0 0.0
    %1425 = vmatprep.subr.mxu0 0.0
    %1426 = vmatpush1.xpose.msra.mxu0 0.0
    %1427 = vmatprep.subr.mxu0 0.0
    %1428 = vmatpush1.xpose.msra.mxu0 0.0
    %1429 = vmatprep.subr.mxu0 0.0
    %1430 = vmatpush1.xpose.msra.mxu0 0.0
    %1431 = vmatprep.subr.mxu0 0.0
    %1432 = vmatpush1.xpose.msra.mxu0 0.0
    %1433 = vmatprep.subr.mxu0 0.0
    %1434 = vmatpush1.xpose.msra.mxu0 0.0
    %1435 = vmatprep.subr.mxu0 0.0
    %1436 = vmatpush1.xpose.msra.mxu0 0.0
    %1437 = vmatprep.mubr.f32.mxu0 0.0
    %1438 = vmatmul.mubr.f32.gmra.mrb[0].mxu0 %v1010
    %v1439 = vpop.f32.mrb[0].mxu0
    %v1440 = vadd.f32 0.0, %v1439
    %v1441 = vpop.f32.mrb[0].mxu0
    %1442 = vdwg.mxu0
    %1443 = vmatprep.subr.mxu0 0.0
    %1444 = vmatpush1.xpose.msra.mxu0 %v963
    %1445 = vmatprep.subr.mxu0 0.0
    %1446 = vmatpush1.xpose.msra.mxu0 0.0
    %1447 = vmatprep.subr.mxu0 0.0
    %1448 = vmatpush1.xpose.msra.mxu0 0.0
    %1449 = vmatprep.subr.mxu0 0.0
    %1450 = vmatpush1.xpose.msra.mxu0 0.0
    %1451 = vmatprep.subr.mxu0 0.0
    %1452 = vmatpush1.xpose.msra.mxu0 0.0
    %1453 = vmatprep.subr.mxu0 0.0
    %1454 = vmatpush1.xpose.msra.mxu0 0.0
    %1455 = vmatprep.subr.mxu0 0.0
    %1456 = vmatpush1.xpose.msra.mxu0 0.0
    %1457 = vmatprep.subr.mxu0 0.0
    %1458 = vmatpush1.xpose.msra.mxu0 0.0
    %1459 = vmatprep.subr.mxu0 0.0
    %1460 = vmatpush1.xpose.msra.mxu0 0.0
    %1461 = vmatprep.subr.mxu0 0.0
    %1462 = vmatpush1.xpose.msra.mxu0 0.0
    %1463 = vmatprep.subr.mxu0 0.0
    %1464 = vmatpush1.xpose.msra.mxu0 0.0
    %1465 = vmatprep.subr.mxu0 0.0
    %1466 = vmatpush1.xpose.msra.mxu0 0.0
    %1467 = vmatprep.subr.mxu0 0.0
    %1468 = vmatpush1.xpose.msra.mxu0 0.0
    %1469 = vmatprep.subr.mxu0 0.0
    %1470 = vmatpush1.xpose.msra.mxu0 0.0
    %1471 = vmatprep.subr.mxu0 0.0
    %1472 = vmatpush1.xpose.msra.mxu0 0.0
    %1473 = vmatprep.subr.mxu0 0.0
    %1474 = vmatpush1.xpose.msra.mxu0 0.0
    %1475 = vmatprep.subr.mxu0 0.0
    %1476 = vmatpush1.xpose.msra.mxu0 0.0
    %1477 = vmatprep.subr.mxu0 0.0
    %1478 = vmatpush1.xpose.msra.mxu0 0.0
    %1479 = vmatprep.subr.mxu0 0.0
    %1480 = vmatpush1.xpose.msra.mxu0 0.0
    %1481 = vmatprep.subr.mxu0 0.0
    %1482 = vmatpush1.xpose.msra.mxu0 0.0
    %1483 = vmatprep.subr.mxu0 0.0
    %1484 = vmatpush1.xpose.msra.mxu0 0.0
    %1485 = vmatprep.subr.mxu0 0.0
    %1486 = vmatpush1.xpose.msra.mxu0 0.0
    %1487 = vmatprep.subr.mxu0 0.0
    %1488 = vmatpush1.xpose.msra.mxu0 0.0
    %1489 = vmatprep.subr.mxu0 0.0
    %1490 = vmatpush1.xpose.msra.mxu0 0.0
    %1491 = vmatprep.subr.mxu0 0.0
    %1492 = vmatpush1.xpose.msra.mxu0 0.0
    %1493 = vmatprep.subr.mxu0 0.0
    %1494 = vmatpush1.xpose.msra.mxu0 0.0
    %1495 = vmatprep.subr.mxu0 0.0
    %1496 = vmatpush1.xpose.msra.mxu0 0.0
    %1497 = vmatprep.subr.mxu0 0.0
    %1498 = vmatpush1.xpose.msra.mxu0 0.0
    %1499 = vmatprep.subr.mxu0 0.0
    %1500 = vmatpush1.xpose.msra.mxu0 0.0
    %1501 = vmatprep.subr.mxu0 0.0
    %1502 = vmatpush1.xpose.msra.mxu0 0.0
    %1503 = vmatprep.subr.mxu0 0.0
    %1504 = vmatpush1.xpose.msra.mxu0 0.0
    %1505 = vmatprep.subr.mxu0 0.0
    %1506 = vmatpush1.xpose.msra.mxu0 0.0
    %1507 = vmatprep.mubr.f32.mxu0 0.0
    %1508 = vmatmul.mubr.f32.gmra.mrb[0].mxu0 %v1012
    %v1509 = vpop.f32.mrb[0].mxu0
    %v1510 = vadd.f32 0.0, %v1509
    %v1511 = vpop.f32.mrb[0].mxu0
    %1512 = vdwg.mxu0
    %1513 = vmatprep.subr.mxu0 0.0
    %1514 = vmatpush1.xpose.msra.mxu0 %v964
    %1515 = vmatprep.subr.mxu0 0.0
    %1516 = vmatpush1.xpose.msra.mxu0 0.0
    %1517 = vmatprep.subr.mxu0 0.0
    %1518 = vmatpush1.xpose.msra.mxu0 0.0
    %1519 = vmatprep.subr.mxu0 0.0
    %1520 = vmatpush1.xpose.msra.mxu0 0.0
    %1521 = vmatprep.subr.mxu0 0.0
    %1522 = vmatpush1.xpose.msra.mxu0 0.0
    %1523 = vmatprep.subr.mxu0 0.0
    %1524 = vmatpush1.xpose.msra.mxu0 0.0
    %1525 = vmatprep.subr.mxu0 0.0
    %1526 = vmatpush1.xpose.msra.mxu0 0.0
    %1527 = vmatprep.subr.mxu0 0.0
    %1528 = vmatpush1.xpose.msra.mxu0 0.0
    %1529 = vmatprep.subr.mxu0 0.0
    %1530 = vmatpush1.xpose.msra.mxu0 0.0
    %1531 = vmatprep.subr.mxu0 0.0
    %1532 = vmatpush1.xpose.msra.mxu0 0.0
    %1533 = vmatprep.subr.mxu0 0.0
    %1534 = vmatpush1.xpose.msra.mxu0 0.0
    %1535 = vmatprep.subr.mxu0 0.0
    %1536 = vmatpush1.xpose.msra.mxu0 0.0
    %1537 = vmatprep.subr.mxu0 0.0
    %1538 = vmatpush1.xpose.msra.mxu0 0.0
    %1539 = vmatprep.subr.mxu0 0.0
    %1540 = vmatpush1.xpose.msra.mxu0 0.0
    %1541 = vmatprep.subr.mxu0 0.0
    %1542 = vmatpush1.xpose.msra.mxu0 0.0
    %1543 = vmatprep.subr.mxu0 0.0
    %1544 = vmatpush1.xpose.msra.mxu0 0.0
    %1545 = vmatprep.subr.mxu0 0.0
    %1546 = vmatpush1.xpose.msra.mxu0 0.0
    %1547 = vmatprep.subr.mxu0 0.0
    %1548 = vmatpush1.xpose.msra.mxu0 0.0
    %1549 = vmatprep.subr.mxu0 0.0
    %1550 = vmatpush1.xpose.msra.mxu0 0.0
    %1551 = vmatprep.subr.mxu0 0.0
    %1552 = vmatpush1.xpose.msra.mxu0 0.0
    %1553 = vmatprep.subr.mxu0 0.0
    %1554 = vmatpush1.xpose.msra.mxu0 0.0
    %1555 = vmatprep.subr.mxu0 0.0
    %1556 = vmatpush1.xpose.msra.mxu0 0.0
    %1557 = vmatprep.subr.mxu0 0.0
    %1558 = vmatpush1.xpose.msra.mxu0 0.0
    %1559 = vmatprep.subr.mxu0 0.0
    %1560 = vmatpush1.xpose.msra.mxu0 0.0
    %1561 = vmatprep.subr.mxu0 0.0
    %1562 = vmatpush1.xpose.msra.mxu0 0.0
    %1563 = vmatprep.subr.mxu0 0.0
    %1564 = vmatpush1.xpose.msra.mxu0 0.0
    %1565 = vmatprep.subr.mxu0 0.0
    %1566 = vmatpush1.xpose.msra.mxu0 0.0
    %1567 = vmatprep.subr.mxu0 0.0
    %1568 = vmatpush1.xpose.msra.mxu0 0.0
    %1569 = vmatprep.subr.mxu0 0.0
    %1570 = vmatpush1.xpose.msra.mxu0 0.0
    %1571 = vmatprep.subr.mxu0 0.0
    %1572 = vmatpush1.xpose.msra.mxu0 0.0
    %1573 = vmatprep.subr.mxu0 0.0
    %1574 = vmatpush1.xpose.msra.mxu0 0.0
    %1575 = vmatprep.subr.mxu0 0.0
    %1576 = vmatpush1.xpose.msra.mxu0 0.0
    %1577 = vmatprep.mubr.f32.mxu0 0.0
    %1578 = vmatmul.mubr.f32.gmra.mrb[0].mxu0 %v1014
    %v1579 = vpop.f32.mrb[0].mxu0
    %v1580 = vadd.f32 0.0, %v1579
    %v1581 = vpop.f32.mrb[0].mxu0
    %1582 = vdwg.mxu0
    %vm1583 = vcmask 57344
    %v1584 = vsel %vm1583, %v1090, -inf
    %1585 = vmax.xlane.f32.xlu0 %v1584
    %v1586 = vpop.xlane.xlu0 %1585
    %v1587 = vsel %vm1583, %v1160, -inf
    %1588 = vmax.xlane.f32.xlu0 %v1587
    %v1589 = vpop.xlane.xlu0 %1588
    %v1590 = vsel %vm1583, %v1230, -inf
    %1591 = vmax.xlane.f32.xlu0 %v1590
    %v1592 = vpop.xlane.xlu0 %1591
    %v1593 = vsel %vm1583, %v1300, -inf
    %1594 = vmax.xlane.f32.xlu0 %v1593
    %v1595 = vpop.xlane.xlu0 %1594
    %v1596 = vsel %vm1583, %v1370, -inf
    %1597 = vmax.xlane.f32.xlu0 %v1596
    %v1598 = vpop.xlane.xlu0 %1597
    %v1599 = vsel %vm1583, %v1440, -inf
    %1600 = vmax.xlane.f32.xlu0 %v1599
    %v1601 = vpop.xlane.xlu0 %1600
    %v1602 = vsel %vm1583, %v1510, -inf
    %1603 = vmax.xlane.f32.xlu0 %v1602
    %v1604 = vpop.xlane.xlu0 %1603
    %v1605 = vsel %vm1583, %v1580, -inf
    %1606 = vmax.xlane.f32.xlu0 %v1605
    %v1607 = vpop.xlane.xlu0 %1606
    %v1608 = vsub.f32 %v1090, %v1586
    %v1609 = vsub.f32 %v1160, %v1589
    %v1610 = vsub.f32 %v1230, %v1592
    %v1611 = vsub.f32 %v1300, %v1595
    %v1612 = vsub.f32 %v1370, %v1598
    %v1613 = vsub.f32 %v1440, %v1601
    %v1614 = vsub.f32 %v1510, %v1604
    %v1615 = vsub.f32 %v1580, %v1607
    %v1616 = vmul.f32 %v1608, 1.442695
    %v1617 = vpow.pop %v1616
    %v1618 = vmul.f32 %v1609, 1.442695
    %v1619 = vpow.pop %v1618
    %v1620 = vmul.f32 %v1610, 1.442695
    %v1621 = vpow.pop %v1620
    %v1622 = vmul.f32 %v1611, 1.442695
    %v1623 = vpow.pop %v1622
    %v1624 = vmul.f32 %v1612, 1.442695
    %v1625 = vpow.pop %v1624
    %v1626 = vmul.f32 %v1613, 1.442695
    %v1627 = vpow.pop %v1626
    %v1628 = vmul.f32 %v1614, 1.442695
    %v1629 = vpow.pop %v1628
    %v1630 = vmul.f32 %v1615, 1.442695
    %v1631 = vpow.pop %v1630
    %v1632 = vsel %vm1583, %v1617, 0.0
    %1633 = vadd.xlane.f32.xlu0 %v1632
    %v1634 = vpop.xlane.xlu0 %1633
    %v1635 = vsel %vm1583, %v1619, 0.0
    %1636 = vadd.xlane.f32.xlu0 %v1635
    %v1637 = vpop.xlane.xlu0 %1636
    %v1638 = vsel %vm1583, %v1621, 0.0
    %1639 = vadd.xlane.f32.xlu0 %v1638
    %v1640 = vpop.xlane.xlu0 %1639
    %v1641 = vsel %vm1583, %v1623, 0.0
    %1642 = vadd.xlane.f32.xlu0 %v1641
    %v1643 = vpop.xlane.xlu0 %1642
    %v1644 = vsel %vm1583, %v1625, 0.0
    %1645 = vadd.xlane.f32.xlu0 %v1644
    %v1646 = vpop.xlane.xlu0 %1645
    %v1647 = vsel %vm1583, %v1627, 0.0
    %1648 = vadd.xlane.f32.xlu0 %v1647
    %v1649 = vpop.xlane.xlu0 %1648
    %v1650 = vsel %vm1583, %v1629, 0.0
    %1651 = vadd.xlane.f32.xlu0 %v1650
    %v1652 = vpop.xlane.xlu0 %1651
    %v1653 = vsel %vm1583, %v1631, 0.0
    %1654 = vadd.xlane.f32.xlu0 %v1653
    %v1655 = vpop.xlane.xlu0 %1654
    %v1656 = vrcp.pop %v1634
    %v1657 = vrcp.pop %v1637
    %v1658 = vrcp.pop %v1640
    %v1659 = vrcp.pop %v1643
    %v1660 = vrcp.pop %v1646
    %v1661 = vrcp.pop %v1649
    %v1662 = vrcp.pop %v1652
    %v1663 = vrcp.pop %v1655
    %v1664 = vmul.f32 %v1634, %v1656
    %v1665 = vmul.f32 %v1637, %v1657
    %v1666 = vmul.f32 %v1640, %v1658
    %v1667 = vmul.f32 %v1643, %v1659
    %v1668 = vmul.f32 %v1646, %v1660
    %v1669 = vmul.f32 %v1649, %v1661
    %v1670 = vmul.f32 %v1652, %v1662
    %v1671 = vmul.f32 %v1655, %v1663
    %v1672 = vsub.f32 2.0, %v1664
    %v1673 = vsub.f32 2.0, %v1665
    %v1674 = vsub.f32 2.0, %v1666
    %v1675 = vsub.f32 2.0, %v1667
    %v1676 = vsub.f32 2.0, %v1668
    %v1677 = vsub.f32 2.0, %v1669
    %v1678 = vsub.f32 2.0, %v1670
    %v1679 = vsub.f32 2.0, %v1671
    %v1680 = vmul.f32 %v1656, %v1672
    %v1681 = vmul.f32 %v1657, %v1673
    %v1682 = vmul.f32 %v1658, %v1674
    %v1683 = vmul.f32 %v1659, %v1675
    %v1684 = vmul.f32 %v1660, %v1676
    %v1685 = vmul.f32 %v1661, %v1677
    %v1686 = vmul.f32 %v1662, %v1678
    %v1687 = vmul.f32 %v1663, %v1679
    %v1688 = vmul.f32 %v1617, %v1680
    %v1689 = vmul.f32 %v1619, %v1681
    %v1690 = vmul.f32 %v1621, %v1682
    %v1691 = vmul.f32 %v1623, %v1683
    %v1692 = vmul.f32 %v1625, %v1684
    %v1693 = vmul.f32 %v1627, %v1685
    %v1694 = vmul.f32 %v1629, %v1686
    %v1695 = vmul.f32 %v1631, %v1687
    %vm1696 = vcmask 64512
    %v1698 = vsel %vm1696, %v1688, 0
    %1700 = vmatprep.subr.mxu0 0.0
    %1701 = vmatpush1.msra.mxu0 %v957
    %1702 = vmatprep.subr.mxu0 0.0
    %1703 = vmatpush1.msra.mxu0 0.0
    %1704 = vmatprep.subr.mxu0 0.0
    %1705 = vmatpush1.msra.mxu0 0.0
    %1706 = vmatprep.subr.mxu0 0.0
    %1707 = vmatpush1.msra.mxu0 0.0
    %1708 = vmatprep.subr.mxu0 0.0
    %1709 = vmatpush1.msra.mxu0 0.0
    %1710 = vmatprep.subr.mxu0 0.0
    %1711 = vmatpush1.msra.mxu0 0.0
    %1712 = vmatprep.subr.mxu0 0.0
    %1713 = vmatpush1.msra.mxu0 0.0
    %1714 = vmatprep.subr.mxu0 0.0
    %1715 = vmatpush1.msra.mxu0 0.0
    %1716 = vmatprep.subr.mxu0 0.0
    %1717 = vmatpush1.msra.mxu0 0.0
    %1718 = vmatprep.subr.mxu0 0.0
    %1719 = vmatpush1.msra.mxu0 0.0
    %1720 = vmatprep.subr.mxu0 0.0
    %1721 = vmatpush1.msra.mxu0 0.0
    %1722 = vmatprep.subr.mxu0 0.0
    %1723 = vmatpush1.msra.mxu0 0.0
    %1724 = vmatprep.subr.mxu0 0.0
    %1725 = vmatpush1.msra.mxu0 0.0
    %1726 = vmatprep.subr.mxu0 0.0
    %1727 = vmatpush1.msra.mxu0 0.0
    %1728 = vmatprep.subr.mxu0 0.0
    %1729 = vmatpush1.msra.mxu0 0.0
    %1730 = vmatprep.subr.mxu0 0.0
    %1731 = vmatpush1.msra.mxu0 0.0
    %1732 = vmatprep.subr.mxu0 0.0
    %1733 = vmatpush1.msra.mxu0 0.0
    %1734 = vmatprep.subr.mxu0 0.0
    %1735 = vmatpush1.msra.mxu0 0.0
    %1736 = vmatprep.subr.mxu0 0.0
    %1737 = vmatpush1.msra.mxu0 0.0
    %1738 = vmatprep.subr.mxu0 0.0
    %1739 = vmatpush1.msra.mxu0 0.0
    %1740 = vmatprep.subr.mxu0 0.0
    %1741 = vmatpush1.msra.mxu0 0.0
    %1742 = vmatprep.subr.mxu0 0.0
    %1743 = vmatpush1.msra.mxu0 0.0
    %1744 = vmatprep.subr.mxu0 0.0
    %1745 = vmatpush1.msra.mxu0 0.0
    %1746 = vmatprep.subr.mxu0 0.0
    %1747 = vmatpush1.msra.mxu0 0.0
    %1748 = vmatprep.subr.mxu0 0.0
    %1749 = vmatpush1.msra.mxu0 0.0
    %1750 = vmatprep.subr.mxu0 0.0
    %1751 = vmatpush1.msra.mxu0 0.0
    %1752 = vmatprep.subr.mxu0 0.0
    %1753 = vmatpush1.msra.mxu0 0.0
    %1754 = vmatprep.subr.mxu0 0.0
    %1755 = vmatpush1.msra.mxu0 0.0
    %1756 = vmatprep.subr.mxu0 0.0
    %1757 = vmatpush1.msra.mxu0 0.0
    %1758 = vmatprep.subr.mxu0 0.0
    %1759 = vmatpush1.msra.mxu0 0.0
    %1760 = vmatprep.subr.mxu0 0.0
    %1761 = vmatpush1.msra.mxu0 0.0
    %1762 = vmatprep.subr.mxu0 0.0
    %1763 = vmatpush1.msra.mxu0 0.0
    %1764 = vmatprep.mubr.f32.mxu0 0.0
    %1765 = vmatmul.mubr.f32.gmra.mrb[0].mxu0 %v1698
    %v1766 = vpop.f32.mrb[0].mxu0
    %v1767 = vadd.f32 0.0, %v1766
    %v1768 = vpop.f32.mrb[0].mxu0
    %1769 = vdwg.mxu0
    %v1771 = vsel %vm1696, %v1689, 0
    %1773 = vmatprep.subr.mxu0 0.0
    %1774 = vmatpush1.msra.mxu0 %v958
    %1775 = vmatprep.subr.mxu0 0.0
    %1776 = vmatpush1.msra.mxu0 0.0
    %1777 = vmatprep.subr.mxu0 0.0
    %1778 = vmatpush1.msra.mxu0 0.0
    %1779 = vmatprep.subr.mxu0 0.0
    %1780 = vmatpush1.msra.mxu0 0.0
    %1781 = vmatprep.subr.mxu0 0.0
    %1782 = vmatpush1.msra.mxu0 0.0
    %1783 = vmatprep.subr.mxu0 0.0
    %1784 = vmatpush1.msra.mxu0 0.0
    %1785 = vmatprep.subr.mxu0 0.0
    %1786 = vmatpush1.msra.mxu0 0.0
    %1787 = vmatprep.subr.mxu0 0.0
    %1788 = vmatpush1.msra.mxu0 0.0
    %1789 = vmatprep.subr.mxu0 0.0
    %1790 = vmatpush1.msra.mxu0 0.0
    %1791 = vmatprep.subr.mxu0 0.0
    %1792 = vmatpush1.msra.mxu0 0.0
    %1793 = vmatprep.subr.mxu0 0.0
    %1794 = vmatpush1.msra.mxu0 0.0
    %1795 = vmatprep.subr.mxu0 0.0
    %1796 = vmatpush1.msra.mxu0 0.0
    %1797 = vmatprep.subr.mxu0 0.0
    %1798 = vmatpush1.msra.mxu0 0.0
    %1799 = vmatprep.subr.mxu0 0.0
    %1800 = vmatpush1.msra.mxu0 0.0
    %1801 = vmatprep.subr.mxu0 0.0
    %1802 = vmatpush1.msra.mxu0 0.0
    %1803 = vmatprep.subr.mxu0 0.0
    %1804 = vmatpush1.msra.mxu0 0.0
    %1805 = vmatprep.subr.mxu0 0.0
    %1806 = vmatpush1.msra.mxu0 0.0
    %1807 = vmatprep.subr.mxu0 0.0
    %1808 = vmatpush1.msra.mxu0 0.0
    %1809 = vmatprep.subr.mxu0 0.0
    %1810 = vmatpush1.msra.mxu0 0.0
    %1811 = vmatprep.subr.mxu0 0.0
    %1812 = vmatpush1.msra.mxu0 0.0
    %1813 = vmatprep.subr.mxu0 0.0
    %1814 = vmatpush1.msra.mxu0 0.0
    %1815 = vmatprep.subr.mxu0 0.0
    %1816 = vmatpush1.msra.mxu0 0.0
    %1817 = vmatprep.subr.mxu0 0.0
    %1818 = vmatpush1.msra.mxu0 0.0
    %1819 = vmatprep.subr.mxu0 0.0
    %1820 = vmatpush1.msra.mxu0 0.0
    %1821 = vmatprep.subr.mxu0 0.0
    %1822 = vmatpush1.msra.mxu0 0.0
    %1823 = vmatprep.subr.mxu0 0.0
    %1824 = vmatpush1.msra.mxu0 0.0
    %1825 = vmatprep.subr.mxu0 0.0
    %1826 = vmatpush1.msra.mxu0 0.0
    %1827 = vmatprep.subr.mxu0 0.0
    %1828 = vmatpush1.msra.mxu0 0.0
    %1829 = vmatprep.subr.mxu0 0.0
    %1830 = vmatpush1.msra.mxu0 0.0
    %1831 = vmatprep.subr.mxu0 0.0
    %1832 = vmatpush1.msra.mxu0 0.0
    %1833 = vmatprep.subr.mxu0 0.0
    %1834 = vmatpush1.msra.mxu0 0.0
    %1835 = vmatprep.subr.mxu0 0.0
    %1836 = vmatpush1.msra.mxu0 0.0
    %1837 = vmatprep.mubr.f32.mxu0 0.0
    %1838 = vmatmul.mubr.f32.gmra.mrb[0].mxu0 %v1771
    %v1839 = vpop.f32.mrb[0].mxu0
    %v1840 = vadd.f32 0.0, %v1839
    %v1841 = vpop.f32.mrb[0].mxu0
    %1842 = vdwg.mxu0
    %v1844 = vsel %vm1696, %v1690, 0
    %1846 = vmatprep.subr.mxu0 0.0
    %1847 = vmatpush1.msra.mxu0 %v959
    %1848 = vmatprep.subr.mxu0 0.0
    %1849 = vmatpush1.msra.mxu0 0.0
    %1850 = vmatprep.subr.mxu0 0.0
    %1851 = vmatpush1.msra.mxu0 0.0
    %1852 = vmatprep.subr.mxu0 0.0
    %1853 = vmatpush1.msra.mxu0 0.0
    %1854 = vmatprep.subr.mxu0 0.0
    %1855 = vmatpush1.msra.mxu0 0.0
    %1856 = vmatprep.subr.mxu0 0.0
    %1857 = vmatpush1.msra.mxu0 0.0
    %1858 = vmatprep.subr.mxu0 0.0
    %1859 = vmatpush1.msra.mxu0 0.0
    %1860 = vmatprep.subr.mxu0 0.0
    %1861 = vmatpush1.msra.mxu0 0.0
    %1862 = vmatprep.subr.mxu0 0.0
    %1863 = vmatpush1.msra.mxu0 0.0
    %1864 = vmatprep.subr.mxu0 0.0
    %1865 = vmatpush1.msra.mxu0 0.0
    %1866 = vmatprep.subr.mxu0 0.0
    %1867 = vmatpush1.msra.mxu0 0.0
    %1868 = vmatprep.subr.mxu0 0.0
    %1869 = vmatpush1.msra.mxu0 0.0
    %1870 = vmatprep.subr.mxu0 0.0
    %1871 = vmatpush1.msra.mxu0 0.0
    %1872 = vmatprep.subr.mxu0 0.0
    %1873 = vmatpush1.msra.mxu0 0.0
    %1874 = vmatprep.subr.mxu0 0.0
    %1875 = vmatpush1.msra.mxu0 0.0
    %1876 = vmatprep.subr.mxu0 0.0
    %1877 = vmatpush1.msra.mxu0 0.0
    %1878 = vmatprep.subr.mxu0 0.0
    %1879 = vmatpush1.msra.mxu0 0.0
    %1880 = vmatprep.subr.mxu0 0.0
    %1881 = vmatpush1.msra.mxu0 0.0
    %1882 = vmatprep.subr.mxu0 0.0
    %1883 = vmatpush1.msra.mxu0 0.0
    %1884 = vmatprep.subr.mxu0 0.0
    %1885 = vmatpush1.msra.mxu0 0.0
    %1886 = vmatprep.subr.mxu0 0.0
    %1887 = vmatpush1.msra.mxu0 0.0
    %1888 = vmatprep.subr.mxu0 0.0
    %1889 = vmatpush1.msra.mxu0 0.0
    %1890 = vmatprep.subr.mxu0 0.0
    %1891 = vmatpush1.msra.mxu0 0.0
    %1892 = vmatprep.subr.mxu0 0.0
    %1893 = vmatpush1.msra.mxu0 0.0
    %1894 = vmatprep.subr.mxu0 0.0
    %1895 = vmatpush1.msra.mxu0 0.0
    %1896 = vmatprep.subr.mxu0 0.0
    %1897 = vmatpush1.msra.mxu0 0.0
    %1898 = vmatprep.subr.mxu0 0.0
    %1899 = vmatpush1.msra.mxu0 0.0
    %1900 = vmatprep.subr.mxu0 0.0
    %1901 = vmatpush1.msra.mxu0 0.0
    %1902 = vmatprep.subr.mxu0 0.0
    %1903 = vmatpush1.msra.mxu0 0.0
    %1904 = vmatprep.subr.mxu0 0.0
    %1905 = vmatpush1.msra.mxu0 0.0
    %1906 = vmatprep.subr.mxu0 0.0
    %1907 = vmatpush1.msra.mxu0 0.0
    %1908 = vmatprep.subr.mxu0 0.0
    %1909 = vmatpush1.msra.mxu0 0.0
    %1910 = vmatprep.mubr.f32.mxu0 0.0
    %1911 = vmatmul.mubr.f32.gmra.mrb[0].mxu0 %v1844
    %v1912 = vpop.f32.mrb[0].mxu0
    %v1913 = vadd.f32 0.0, %v1912
    %v1914 = vpop.f32.mrb[0].mxu0
    %1915 = vdwg.mxu0
    %v1917 = vsel %vm1696, %v1691, 0
    %1919 = vmatprep.subr.mxu0 0.0
    %1920 = vmatpush1.msra.mxu0 %v960
    %1921 = vmatprep.subr.mxu0 0.0
    %1922 = vmatpush1.msra.mxu0 0.0
    %1923 = vmatprep.subr.mxu0 0.0
    %1924 = vmatpush1.msra.mxu0 0.0
    %1925 = vmatprep.subr.mxu0 0.0
    %1926 = vmatpush1.msra.mxu0 0.0
    %1927 = vmatprep.subr.mxu0 0.0
    %1928 = vmatpush1.msra.mxu0 0.0
    %1929 = vmatprep.subr.mxu0 0.0
    %1930 = vmatpush1.msra.mxu0 0.0
    %1931 = vmatprep.subr.mxu0 0.0
    %1932 = vmatpush1.msra.mxu0 0.0
    %1933 = vmatprep.subr.mxu0 0.0
    %1934 = vmatpush1.msra.mxu0 0.0
    %1935 = vmatprep.subr.mxu0 0.0
    %1936 = vmatpush1.msra.mxu0 0.0
    %1937 = vmatprep.subr.mxu0 0.0
    %1938 = vmatpush1.msra.mxu0 0.0
    %1939 = vmatprep.subr.mxu0 0.0
    %1940 = vmatpush1.msra.mxu0 0.0
    %1941 = vmatprep.subr.mxu0 0.0
    %1942 = vmatpush1.msra.mxu0 0.0
    %1943 = vmatprep.subr.mxu0 0.0
    %1944 = vmatpush1.msra.mxu0 0.0
    %1945 = vmatprep.subr.mxu0 0.0
    %1946 = vmatpush1.msra.mxu0 0.0
    %1947 = vmatprep.subr.mxu0 0.0
    %1948 = vmatpush1.msra.mxu0 0.0
    %1949 = vmatprep.subr.mxu0 0.0
    %1950 = vmatpush1.msra.mxu0 0.0
    %1951 = vmatprep.subr.mxu0 0.0
    %1952 = vmatpush1.msra.mxu0 0.0
    %1953 = vmatprep.subr.mxu0 0.0
    %1954 = vmatpush1.msra.mxu0 0.0
    %1955 = vmatprep.subr.mxu0 0.0
    %1956 = vmatpush1.msra.mxu0 0.0
    %1957 = vmatprep.subr.mxu0 0.0
    %1958 = vmatpush1.msra.mxu0 0.0
    %1959 = vmatprep.subr.mxu0 0.0
    %1960 = vmatpush1.msra.mxu0 0.0
    %1961 = vmatprep.subr.mxu0 0.0
    %1962 = vmatpush1.msra.mxu0 0.0
    %1963 = vmatprep.subr.mxu0 0.0
    %1964 = vmatpush1.msra.mxu0 0.0
    %1965 = vmatprep.subr.mxu0 0.0
    %1966 = vmatpush1.msra.mxu0 0.0
    %1967 = vmatprep.subr.mxu0 0.0
    %1968 = vmatpush1.msra.mxu0 0.0
    %1969 = vmatprep.subr.mxu0 0.0
    %1970 = vmatpush1.msra.mxu0 0.0
    %1971 = vmatprep.subr.mxu0 0.0
    %1972 = vmatpush1.msra.mxu0 0.0
    %1973 = vmatprep.subr.mxu0 0.0
    %1974 = vmatpush1.msra.mxu0 0.0
    %1975 = vmatprep.subr.mxu0 0.0
    %1976 = vmatpush1.msra.mxu0 0.0
    %1977 = vmatprep.subr.mxu0 0.0
    %1978 = vmatpush1.msra.mxu0 0.0
    %1979 = vmatprep.subr.mxu0 0.0
    %1980 = vmatpush1.msra.mxu0 0.0
    %1981 = vmatprep.subr.mxu0 0.0
    %1982 = vmatpush1.msra.mxu0 0.0
    %1983 = vmatprep.mubr.f32.mxu0 0.0
    %1984 = vmatmul.mubr.f32.gmra.mrb[0].mxu0 %v1917
    %v1985 = vpop.f32.mrb[0].mxu0
    %v1986 = vadd.f32 0.0, %v1985
    %v1987 = vpop.f32.mrb[0].mxu0
    %1988 = vdwg.mxu0
    %v1990 = vsel %vm1696, %v1692, 0
    %1992 = vmatprep.subr.mxu0 0.0
    %1993 = vmatpush1.msra.mxu0 %v961
    %1994 = vmatprep.subr.mxu0 0.0
    %1995 = vmatpush1.msra.mxu0 0.0
    %1996 = vmatprep.subr.mxu0 0.0
    %1997 = vmatpush1.msra.mxu0 0.0
    %1998 = vmatprep.subr.mxu0 0.0
    %1999 = vmatpush1.msra.mxu0 0.0
    %2000 = vmatprep.subr.mxu0 0.0
    %2001 = vmatpush1.msra.mxu0 0.0
    %2002 = vmatprep.subr.mxu0 0.0
    %2003 = vmatpush1.msra.mxu0 0.0
    %2004 = vmatprep.subr.mxu0 0.0
    %2005 = vmatpush1.msra.mxu0 0.0
    %2006 = vmatprep.subr.mxu0 0.0
    %2007 = vmatpush1.msra.mxu0 0.0
    %2008 = vmatprep.subr.mxu0 0.0
    %2009 = vmatpush1.msra.mxu0 0.0
    %2010 = vmatprep.subr.mxu0 0.0
    %2011 = vmatpush1.msra.mxu0 0.0
    %2012 = vmatprep.subr.mxu0 0.0
    %2013 = vmatpush1.msra.mxu0 0.0
    %2014 = vmatprep.subr.mxu0 0.0
    %2015 = vmatpush1.msra.mxu0 0.0
    %2016 = vmatprep.subr.mxu0 0.0
    %2017 = vmatpush1.msra.mxu0 0.0
    %2018 = vmatprep.subr.mxu0 0.0
    %2019 = vmatpush1.msra.mxu0 0.0
    %2020 = vmatprep.subr.mxu0 0.0
    %2021 = vmatpush1.msra.mxu0 0.0
    %2022 = vmatprep.subr.mxu0 0.0
    %2023 = vmatpush1.msra.mxu0 0.0
    %2024 = vmatprep.subr.mxu0 0.0
    %2025 = vmatpush1.msra.mxu0 0.0
    %2026 = vmatprep.subr.mxu0 0.0
    %2027 = vmatpush1.msra.mxu0 0.0
    %2028 = vmatprep.subr.mxu0 0.0
    %2029 = vmatpush1.msra.mxu0 0.0
    %2030 = vmatprep.subr.mxu0 0.0
    %2031 = vmatpush1.msra.mxu0 0.0
    %2032 = vmatprep.subr.mxu0 0.0
    %2033 = vmatpush1.msra.mxu0 0.0
    %2034 = vmatprep.subr.mxu0 0.0
    %2035 = vmatpush1.msra.mxu0 0.0
    %2036 = vmatprep.subr.mxu0 0.0
    %2037 = vmatpush1.msra.mxu0 0.0
    %2038 = vmatprep.subr.mxu0 0.0
    %2039 = vmatpush1.msra.mxu0 0.0
    %2040 = vmatprep.subr.mxu0 0.0
    %2041 = vmatpush1.msra.mxu0 0.0
    %2042 = vmatprep.subr.mxu0 0.0
    %2043 = vmatpush1.msra.mxu0 0.0
    %2044 = vmatprep.subr.mxu0 0.0
    %2045 = vmatpush1.msra.mxu0 0.0
    %2046 = vmatprep.subr.mxu0 0.0
    %2047 = vmatpush1.msra.mxu0 0.0
    %2048 = vmatprep.subr.mxu0 0.0
    %2049 = vmatpush1.msra.mxu0 0.0
    %2050 = vmatprep.subr.mxu0 0.0
    %2051 = vmatpush1.msra.mxu0 0.0
    %2052 = vmatprep.subr.mxu0 0.0
    %2053 = vmatpush1.msra.mxu0 0.0
    %2054 = vmatprep.subr.mxu0 0.0
    %2055 = vmatpush1.msra.mxu0 0.0
    %2056 = vmatprep.mubr.f32.mxu0 0.0
    %2057 = vmatmul.mubr.f32.gmra.mrb[0].mxu0 %v1990
    %v2058 = vpop.f32.mrb[0].mxu0
    %v2059 = vadd.f32 0.0, %v2058
    %v2060 = vpop.f32.mrb[0].mxu0
    %2061 = vdwg.mxu0
    %v2063 = vsel %vm1696, %v1693, 0
    %2065 = vmatprep.subr.mxu0 0.0
    %2066 = vmatpush1.msra.mxu0 %v962
    %2067 = vmatprep.subr.mxu0 0.0
    %2068 = vmatpush1.msra.mxu0 0.0
    %2069 = vmatprep.subr.mxu0 0.0
    %2070 = vmatpush1.msra.mxu0 0.0
    %2071 = vmatprep.subr.mxu0 0.0
    %2072 = vmatpush1.msra.mxu0 0.0
    %2073 = vmatprep.subr.mxu0 0.0
    %2074 = vmatpush1.msra.mxu0 0.0
    %2075 = vmatprep.subr.mxu0 0.0
    %2076 = vmatpush1.msra.mxu0 0.0
    %2077 = vmatprep.subr.mxu0 0.0
    %2078 = vmatpush1.msra.mxu0 0.0
    %2079 = vmatprep.subr.mxu0 0.0
    %2080 = vmatpush1.msra.mxu0 0.0
    %2081 = vmatprep.subr.mxu0 0.0
    %2082 = vmatpush1.msra.mxu0 0.0
    %2083 = vmatprep.subr.mxu0 0.0
    %2084 = vmatpush1.msra.mxu0 0.0
    %2085 = vmatprep.subr.mxu0 0.0
    %2086 = vmatpush1.msra.mxu0 0.0
    %2087 = vmatprep.subr.mxu0 0.0
    %2088 = vmatpush1.msra.mxu0 0.0
    %2089 = vmatprep.subr.mxu0 0.0
    %2090 = vmatpush1.msra.mxu0 0.0
    %2091 = vmatprep.subr.mxu0 0.0
    %2092 = vmatpush1.msra.mxu0 0.0
    %2093 = vmatprep.subr.mxu0 0.0
    %2094 = vmatpush1.msra.mxu0 0.0
    %2095 = vmatprep.subr.mxu0 0.0
    %2096 = vmatpush1.msra.mxu0 0.0
    %2097 = vmatprep.subr.mxu0 0.0
    %2098 = vmatpush1.msra.mxu0 0.0
    %2099 = vmatprep.subr.mxu0 0.0
    %2100 = vmatpush1.msra.mxu0 0.0
    %2101 = vmatprep.subr.mxu0 0.0
    %2102 = vmatpush1.msra.mxu0 0.0
    %2103 = vmatprep.subr.mxu0 0.0
    %2104 = vmatpush1.msra.mxu0 0.0
    %2105 = vmatprep.subr.mxu0 0.0
    %2106 = vmatpush1.msra.mxu0 0.0
    %2107 = vmatprep.subr.mxu0 0.0
    %2108 = vmatpush1.msra.mxu0 0.0
    %2109 = vmatprep.subr.mxu0 0.0
    %2110 = vmatpush1.msra.mxu0 0.0
    %2111 = vmatprep.subr.mxu0 0.0
    %2112 = vmatpush1.msra.mxu0 0.0
    %2113 = vmatprep.subr.mxu0 0.0
    %2114 = vmatpush1.msra.mxu0 0.0
    %2115 = vmatprep.subr.mxu0 0.0
    %2116 = vmatpush1.msra.mxu0 0.0
    %2117 = vmatprep.subr.mxu0 0.0
    %2118 = vmatpush1.msra.mxu0 0.0
    %2119 = vmatprep.subr.mxu0 0.0
    %2120 = vmatpush1.msra.mxu0 0.0
    %2121 = vmatprep.subr.mxu0 0.0
    %2122 = vmatpush1.msra.mxu0 0.0
    %2123 = vmatprep.subr.mxu0 0.0
    %2124 = vmatpush1.msra.mxu0 0.0
    %2125 = vmatprep.subr.mxu0 0.0
    %2126 = vmatpush1.msra.mxu0 0.0
    %2127 = vmatprep.subr.mxu0 0.0
    %2128 = vmatpush1.msra.mxu0 0.0
    %2129 = vmatprep.mubr.f32.mxu0 0.0
    %2130 = vmatmul.mubr.f32.gmra.mrb[0].mxu0 %v2063
    %v2131 = vpop.f32.mrb[0].mxu0
    %v2132 = vadd.f32 0.0, %v2131
    %v2133 = vpop.f32.mrb[0].mxu0
    %2134 = vdwg.mxu0
    %v2136 = vsel %vm1696, %v1694, 0
    %2138 = vmatprep.subr.mxu0 0.0
    %2139 = vmatpush1.msra.mxu0 %v963
    %2140 = vmatprep.subr.mxu0 0.0
    %2141 = vmatpush1.msra.mxu0 0.0
    %2142 = vmatprep.subr.mxu0 0.0
    %2143 = vmatpush1.msra.mxu0 0.0
    %2144 = vmatprep.subr.mxu0 0.0
    %2145 = vmatpush1.msra.mxu0 0.0
    %2146 = vmatprep.subr.mxu0 0.0
    %2147 = vmatpush1.msra.mxu0 0.0
    %2148 = vmatprep.subr.mxu0 0.0
    %2149 = vmatpush1.msra.mxu0 0.0
    %2150 = vmatprep.subr.mxu0 0.0
    %2151 = vmatpush1.msra.mxu0 0.0
    %2152 = vmatprep.subr.mxu0 0.0
    %2153 = vmatpush1.msra.mxu0 0.0
    %2154 = vmatprep.subr.mxu0 0.0
    %2155 = vmatpush1.msra.mxu0 0.0
    %2156 = vmatprep.subr.mxu0 0.0
    %2157 = vmatpush1.msra.mxu0 0.0
    %2158 = vmatprep.subr.mxu0 0.0
    %2159 = vmatpush1.msra.mxu0 0.0
    %2160 = vmatprep.subr.mxu0 0.0
    %2161 = vmatpush1.msra.mxu0 0.0
    %2162 = vmatprep.subr.mxu0 0.0
    %2163 = vmatpush1.msra.mxu0 0.0
    %2164 = vmatprep.subr.mxu0 0.0
    %2165 = vmatpush1.msra.mxu0 0.0
    %2166 = vmatprep.subr.mxu0 0.0
    %2167 = vmatpush1.msra.mxu0 0.0
    %2168 = vmatprep.subr.mxu0 0.0
    %2169 = vmatpush1.msra.mxu0 0.0
    %2170 = vmatprep.subr.mxu0 0.0
    %2171 = vmatpush1.msra.mxu0 0.0
    %2172 = vmatprep.subr.mxu0 0.0
    %2173 = vmatpush1.msra.mxu0 0.0
    %2174 = vmatprep.subr.mxu0 0.0
    %2175 = vmatpush1.msra.mxu0 0.0
    %2176 = vmatprep.subr.mxu0 0.0
    %2177 = vmatpush1.msra.mxu0 0.0
    %2178 = vmatprep.subr.mxu0 0.0
    %2179 = vmatpush1.msra.mxu0 0.0
    %2180 = vmatprep.subr.mxu0 0.0
    %2181 = vmatpush1.msra.mxu0 0.0
    %2182 = vmatprep.subr.mxu0 0.0
    %2183 = vmatpush1.msra.mxu0 0.0
    %2184 = vmatprep.subr.mxu0 0.0
    %2185 = vmatpush1.msra.mxu0 0.0
    %2186 = vmatprep.subr.mxu0 0.0
    %2187 = vmatpush1.msra.mxu0 0.0
    %2188 = vmatprep.subr.mxu0 0.0
    %2189 = vmatpush1.msra.mxu0 0.0
    %2190 = vmatprep.subr.mxu0 0.0
    %2191 = vmatpush1.msra.mxu0 0.0
    %2192 = vmatprep.subr.mxu0 0.0
    %2193 = vmatpush1.msra.mxu0 0.0
    %2194 = vmatprep.subr.mxu0 0.0
    %2195 = vmatpush1.msra.mxu0 0.0
    %2196 = vmatprep.subr.mxu0 0.0
    %2197 = vmatpush1.msra.mxu0 0.0
    %2198 = vmatprep.subr.mxu0 0.0
    %2199 = vmatpush1.msra.mxu0 0.0
    %2200 = vmatprep.subr.mxu0 0.0
    %2201 = vmatpush1.msra.mxu0 0.0
    %2202 = vmatprep.mubr.f32.mxu0 0.0
    %2203 = vmatmul.mubr.f32.gmra.mrb[0].mxu0 %v2136
    %v2204 = vpop.f32.mrb[0].mxu0
    %v2205 = vadd.f32 0.0, %v2204
    %v2206 = vpop.f32.mrb[0].mxu0
    %2207 = vdwg.mxu0
    %v2209 = vsel %vm1696, %v1695, 0
    %2211 = vmatprep.subr.mxu0 0.0
    %2212 = vmatpush1.msra.mxu0 %v964
    %2213 = vmatprep.subr.mxu0 0.0
    %2214 = vmatpush1.msra.mxu0 0.0
    %2215 = vmatprep.subr.mxu0 0.0
    %2216 = vmatpush1.msra.mxu0 0.0
    %2217 = vmatprep.subr.mxu0 0.0
    %2218 = vmatpush1.msra.mxu0 0.0
    %2219 = vmatprep.subr.mxu0 0.0
    %2220 = vmatpush1.msra.mxu0 0.0
    %2221 = vmatprep.subr.mxu0 0.0
    %2222 = vmatpush1.msra.mxu0 0.0
    %2223 = vmatprep.subr.mxu0 0.0
    %2224 = vmatpush1.msra.mxu0 0.0
    %2225 = vmatprep.subr.mxu0 0.0
    %2226 = vmatpush1.msra.mxu0 0.0
    %2227 = vmatprep.subr.mxu0 0.0
    %2228 = vmatpush1.msra.mxu0 0.0
    %2229 = vmatprep.subr.mxu0 0.0
    %2230 = vmatpush1.msra.mxu0 0.0
    %2231 = vmatprep.subr.mxu0 0.0
    %2232 = vmatpush1.msra.mxu0 0.0
    %2233 = vmatprep.subr.mxu0 0.0
    %2234 = vmatpush1.msra.mxu0 0.0
    %2235 = vmatprep.subr.mxu0 0.0
    %2236 = vmatpush1.msra.mxu0 0.0
    %2237 = vmatprep.subr.mxu0 0.0
    %2238 = vmatpush1.msra.mxu0 0.0
    %2239 = vmatprep.subr.mxu0 0.0
    %2240 = vmatpush1.msra.mxu0 0.0
    %2241 = vmatprep.subr.mxu0 0.0
    %2242 = vmatpush1.msra.mxu0 0.0
    %2243 = vmatprep.subr.mxu0 0.0
    %2244 = vmatpush1.msra.mxu0 0.0
    %2245 = vmatprep.subr.mxu0 0.0
    %2246 = vmatpush1.msra.mxu0 0.0
    %2247 = vmatprep.subr.mxu0 0.0
    %2248 = vmatpush1.msra.mxu0 0.0
    %2249 = vmatprep.subr.mxu0 0.0
    %2250 = vmatpush1.msra.mxu0 0.0
    %2251 = vmatprep.subr.mxu0 0.0
    %2252 = vmatpush1.msra.mxu0 0.0
    %2253 = vmatprep.subr.mxu0 0.0
    %2254 = vmatpush1.msra.mxu0 0.0
    %2255 = vmatprep.subr.mxu0 0.0
    %2256 = vmatpush1.msra.mxu0 0.0
    %2257 = vmatprep.subr.mxu0 0.0
    %2258 = vmatpush1.msra.mxu0 0.0
    %2259 = vmatprep.subr.mxu0 0.0
    %2260 = vmatpush1.msra.mxu0 0.0
    %2261 = vmatprep.subr.mxu0 0.0
    %2262 = vmatpush1.msra.mxu0 0.0
    %2263 = vmatprep.subr.mxu0 0.0
    %2264 = vmatpush1.msra.mxu0 0.0
    %2265 = vmatprep.subr.mxu0 0.0
    %2266 = vmatpush1.msra.mxu0 0.0
    %2267 = vmatprep.subr.mxu0 0.0
    %2268 = vmatpush1.msra.mxu0 0.0
    %2269 = vmatprep.subr.mxu0 0.0
    %2270 = vmatpush1.msra.mxu0 0.0
    %2271 = vmatprep.subr.mxu0 0.0
    %2272 = vmatpush1.msra.mxu0 0.0
    %2273 = vmatprep.subr.mxu0 0.0
    %2274 = vmatpush1.msra.mxu0 0.0
    %2275 = vmatprep.mubr.f32.mxu0 0.0
    %2276 = vmatmul.mubr.f32.gmra.mrb[0].mxu0 %v2209
    %v2277 = vpop.f32.mrb[0].mxu0
    %v2278 = vadd.f32 0.0, %v2277
    %v2279 = vpop.f32.mrb[0].mxu0
    %2280 = vdwg.mxu0
    %v2281 = vld [vmem:[%s7] sm:$0xff]
    %v2282 = vld [vmem:[%s7 + $0x8] sm:$0xff]
    %v2283 = vld [vmem:[%s7 + $0x10] sm:$0xff]
    %v2284 = vld [vmem:[%s7 + $0x18] sm:$0xff]
    %v2285 = vld [vmem:[%s7 + $0x20] sm:$0xff]
    %v2286 = vld [vmem:[%s7 + $0x28] sm:$0xff]
    %v2287 = vld [vmem:[%s7 + $0x30] sm:$0xff]
    %v2288 = vld [vmem:[%s7 + $0x38] sm:$0xff]
    %v2289 = vld [vmem:[%s7 + $0x40] sm:$0xff]
    %v2290 = vld [vmem:[%s7 + $0x48] sm:$0xff]
    %v2291 = vld [vmem:[%s7 + $0x50] sm:$0xff]
    %v2292 = vld [vmem:[%s7 + $0x58] sm:$0xff]
    %v2293 = vld [vmem:[%s7 + $0x60] sm:$0xff]
    %v2294 = vld [vmem:[%s7 + $0x68] sm:$0xff]
    %v2295 = vld [vmem:[%s7 + $0x70] sm:$0xff]
    %v2296 = vld [vmem:[%s7 + $0x78] sm:$0xff]
    %v2297 = vld [vmem:[#allocation6] sm:$0xff]
    %v2298 = vld [vmem:[#allocation6 + $0x8] sm:$0xff]
    %v2299 = vld [vmem:[#allocation6 + $0x10] sm:$0xff]
    %v2300 = vld [vmem:[#allocation6 + $0x18] sm:$0xff]
    %v2301 = vld [vmem:[#allocation6 + $0x20] sm:$0xff]
    %v2302 = vld [vmem:[#allocation6 + $0x28] sm:$0xff]
    %v2303 = vld [vmem:[#allocation6 + $0x30] sm:$0xff]
    %v2304 = vld [vmem:[#allocation6 + $0x38] sm:$0xff]
    %v2305 = vld [vmem:[#allocation6 + $0x40] sm:$0xff]
    %v2306 = vld [vmem:[#allocation6 + $0x48] sm:$0xff]
    %v2307 = vld [vmem:[#allocation6 + $0x50] sm:$0xff]
    %v2308 = vld [vmem:[#allocation6 + $0x58] sm:$0xff]
    %v2309 = vld [vmem:[#allocation6 + $0x60] sm:$0xff]
    %v2310 = vld [vmem:[#allocation6 + $0x68] sm:$0xff]
    %v2311 = vld [vmem:[#allocation6 + $0x70] sm:$0xff]
    %v2312 = vld [vmem:[#allocation6 + $0x78] sm:$0xff]
    %v2321 = vrot.slane %v1840, 7
    %vm2322 = vcmask 1041409
    %v2323 = vsel %vm2322, %v2321, %v1767
    %v2324 = vrot.slane %v1913, 6
    %vm2325 = vcmask 1042434
    %v2326 = vsel %vm2325, %v2324, %v2323
    %v2327 = vrot.slane %v1986, 5
    %vm2328 = vcmask 1043459
    %v2329 = vsel %vm2328, %v2327, %v2326
    %v2330 = vrot.slane %v2059, 4
    %vm2331 = vcmask 1044484
    %v2332 = vsel %vm2331, %v2330, %v2329
    %v2333 = vrot.slane %v2132, 3
    %vm2334 = vcmask 1045509
    %v2335 = vsel %vm2334, %v2333, %v2332
    %v2336 = vrot.slane %v2205, 2
    %vm2337 = vcmask 1046534
    %v2338 = vsel %vm2337, %v2336, %v2335
    %v2339 = vrot.slane %v2278, 1
    %vm2340 = vcmask 1047559
    %v2341 = vsel %vm2340, %v2339, %v2338
    %2343 = vmatprep.subr.mxu0 0.0
    %2344 = vmatpush1.msra.mxu0 %v2297
    %2345 = vmatprep.subr.mxu0 0.0
    %2346 = vmatpush1.msra.mxu0 %v2298
    %2347 = vmatprep.subr.mxu0 0.0
    %2348 = vmatpush1.msra.mxu0 %v2299
    %2349 = vmatprep.subr.mxu0 0.0
    %2350 = vmatpush1.msra.mxu0 %v2300
    %2351 = vmatprep.subr.mxu0 0.0
    %2352 = vmatpush1.msra.mxu0 %v2301
    %2353 = vmatprep.subr.mxu0 0.0
    %2354 = vmatpush1.msra.mxu0 %v2302
    %2355 = vmatprep.subr.mxu0 0.0
    %2356 = vmatpush1.msra.mxu0 %v2303
    %2357 = vmatprep.subr.mxu0 0.0
    %2358 = vmatpush1.msra.mxu0 %v2304
    %2359 = vmatprep.subr.mxu0 0.0
    %2360 = vmatpush1.msra.mxu0 %v2305
    %2361 = vmatprep.subr.mxu0 0.0
    %2362 = vmatpush1.msra.mxu0 %v2306
    %2363 = vmatprep.subr.mxu0 0.0
    %2364 = vmatpush1.msra.mxu0 %v2307
    %2365 = vmatprep.subr.mxu0 0.0
    %2366 = vmatpush1.msra.mxu0 %v2308
    %2367 = vmatprep.subr.mxu0 0.0
    %2368 = vmatpush1.msra.mxu0 %v2309
    %2369 = vmatprep.subr.mxu0 0.0
    %2370 = vmatpush1.msra.mxu0 %v2310
    %2371 = vmatprep.subr.mxu0 0.0
    %2372 = vmatpush1.msra.mxu0 %v2311
    %2373 = vmatprep.subr.mxu0 0.0
    %2374 = vmatpush1.msra.mxu0 %v2312
    %2375 = vmatprep.subr.mxu0 0.0
    %2376 = vmatpush1.msra.mxu0 0.0
    %2377 = vmatprep.subr.mxu0 0.0
    %2378 = vmatpush1.msra.mxu0 0.0
    %2379 = vmatprep.subr.mxu0 0.0
    %2380 = vmatpush1.msra.mxu0 0.0
    %2381 = vmatprep.subr.mxu0 0.0
    %2382 = vmatpush1.msra.mxu0 0.0
    %2383 = vmatprep.subr.mxu0 0.0
    %2384 = vmatpush1.msra.mxu0 0.0
    %2385 = vmatprep.subr.mxu0 0.0
    %2386 = vmatpush1.msra.mxu0 0.0
    %2387 = vmatprep.subr.mxu0 0.0
    %2388 = vmatpush1.msra.mxu0 0.0
    %2389 = vmatprep.subr.mxu0 0.0
    %2390 = vmatpush1.msra.mxu0 0.0
    %2391 = vmatprep.subr.mxu0 0.0
    %2392 = vmatpush1.msra.mxu0 0.0
    %2393 = vmatprep.subr.mxu0 0.0
    %2394 = vmatpush1.msra.mxu0 0.0
    %2395 = vmatprep.subr.mxu0 0.0
    %2396 = vmatpush1.msra.mxu0 0.0
    %2397 = vmatprep.subr.mxu0 0.0
    %2398 = vmatpush1.msra.mxu0 0.0
    %2399 = vmatprep.subr.mxu0 0.0
    %2400 = vmatpush1.msra.mxu0 0.0
    %2401 = vmatprep.subr.mxu0 0.0
    %2402 = vmatpush1.msra.mxu0 0.0
    %2403 = vmatprep.subr.mxu0 0.0
    %2404 = vmatpush1.msra.mxu0 0.0
    %2405 = vmatprep.subr.mxu0 0.0
    %2406 = vmatpush1.msra.mxu0 0.0
    %2407 = vmatprep.mubr.f32.mxu0 0.0
    %2408 = vmatmul.mubr.f32.gmra.mrb[0].mxu0 %v2341
    %v2409 = vpop.f32.mrb[0].mxu0
    %v2410 = vadd.f32 0.0, %v2409
    %v2411 = vpop.f32.mrb[0].mxu0
    %2412 = vdwg.mxu0
    %2413 = vmatprep.subr.mxu0 0.0
    %2414 = vmatpush1.msra.mxu0 %v2281
    %2415 = vmatprep.subr.mxu0 0.0
    %2416 = vmatpush1.msra.mxu0 %v2282
    %2417 = vmatprep.subr.mxu0 0.0
    %2418 = vmatpush1.msra.mxu0 %v2283
    %2419 = vmatprep.subr.mxu0 0.0
    %2420 = vmatpush1.msra.mxu0 %v2284
    %2421 = vmatprep.subr.mxu0 0.0
    %2422 = vmatpush1.msra.mxu0 %v2285
    %2423 = vmatprep.subr.mxu0 0.0
    %2424 = vmatpush1.msra.mxu0 %v2286
    %2425 = vmatprep.subr.mxu0 0.0
    %2426 = vmatpush1.msra.mxu0 %v2287
    %2427 = vmatprep.subr.mxu0 0.0
    %2428 = vmatpush1.msra.mxu0 %v2288
    %2429 = vmatprep.subr.mxu0 0.0
    %2430 = vmatpush1.msra.mxu0 %v2289
    %2431 = vmatprep.subr.mxu0 0.0
    %2432 = vmatpush1.msra.mxu0 %v2290
    %2433 = vmatprep.subr.mxu0 0.0
    %2434 = vmatpush1.msra.mxu0 %v2291
    %2435 = vmatprep.subr.mxu0 0.0
    %2436 = vmatpush1.msra.mxu0 %v2292
    %2437 = vmatprep.subr.mxu0 0.0
    %2438 = vmatpush1.msra.mxu0 %v2293
    %2439 = vmatprep.subr.mxu0 0.0
    %2440 = vmatpush1.msra.mxu0 %v2294
    %2441 = vmatprep.subr.mxu0 0.0
    %2442 = vmatpush1.msra.mxu0 %v2295
    %2443 = vmatprep.subr.mxu0 0.0
    %2444 = vmatpush1.msra.mxu0 %v2296
    %2445 = vmatprep.subr.mxu0 0.0
    %2446 = vmatpush1.msra.mxu0 0.0
    %2447 = vmatprep.subr.mxu0 0.0
    %2448 = vmatpush1.msra.mxu0 0.0
    %2449 = vmatprep.subr.mxu0 0.0
    %2450 = vmatpush1.msra.mxu0 0.0
    %2451 = vmatprep.subr.mxu0 0.0
    %2452 = vmatpush1.msra.mxu0 0.0
    %2453 = vmatprep.subr.mxu0 0.0
    %2454 = vmatpush1.msra.mxu0 0.0
    %2455 = vmatprep.subr.mxu0 0.0
    %2456 = vmatpush1.msra.mxu0 0.0
    %2457 = vmatprep.subr.mxu0 0.0
    %2458 = vmatpush1.msra.mxu0 0.0
    %2459 = vmatprep.subr.mxu0 0.0
    %2460 = vmatpush1.msra.mxu0 0.0
    %2461 = vmatprep.subr.mxu0 0.0
    %2462 = vmatpush1.msra.mxu0 0.0
    %2463 = vmatprep.subr.mxu0 0.0
    %2464 = vmatpush1.msra.mxu0 0.0
    %2465 = vmatprep.subr.mxu0 0.0
    %2466 = vmatpush1.msra.mxu0 0.0
    %2467 = vmatprep.subr.mxu0 0.0
    %2468 = vmatpush1.msra.mxu0 0.0
    %2469 = vmatprep.subr.mxu0 0.0
    %2470 = vmatpush1.msra.mxu0 0.0
    %2471 = vmatprep.subr.mxu0 0.0
    %2472 = vmatpush1.msra.mxu0 0.0
    %2473 = vmatprep.subr.mxu0 0.0
    %2474 = vmatpush1.msra.mxu0 0.0
    %2475 = vmatprep.subr.mxu0 0.0
    %2476 = vmatpush1.msra.mxu0 0.0
    %2477 = vmatprep.mubr.f32.mxu0 0.0
    %2478 = vmatmul.mubr.f32.gmra.mrb[0].mxu0 %v954
    %v2479 = vpop.f32.mrb[0].mxu0
    %v2480 = vadd.f32 %v2410, %v2479
    %v2481 = vpop.f32.mrb[0].mxu0
    %2482 = vdwg.mxu0
    %v2483 = vld [vmem:[%s9] sm:$0x1]
    %v2485 = vlaneseq
    %v2486 = vshrl.u32 %v2485, 7
    %v2487 = vsub.s32 0, %v2486
    %v2488 = vrot.slane %v2483, %v2487
    %v2490 = vadd.f32 %v2480, %v2488
    %v2491 = vtanh.pop %v2490
    %v2492 = vld [vmem:[#allocation7] sm:$0xff]
    %v2493 = vld [vmem:[#allocation7 + $0x8] sm:$0xff]
    %v2494 = vld [vmem:[#allocation7 + $0x10] sm:$0xff]
    %v2495 = vld [vmem:[#allocation7 + $0x18] sm:$0xff]
    %v2496 = vld [vmem:[#allocation7 + $0x20] sm:$0xff]
    %v2497 = vld [vmem:[#allocation7 + $0x28] sm:$0xff]
    %v2498 = vld [vmem:[#allocation7 + $0x30] sm:$0xff]
    %v2499 = vld [vmem:[#allocation7 + $0x38] sm:$0xff]
    %v2500 = vld [vmem:[#allocation7 + $0x40] sm:$0xff]
    %v2501 = vld [vmem:[#allocation7 + $0x48] sm:$0xff]
    %v2502 = vld [vmem:[#allocation7 + $0x50] sm:$0xff]
    %v2503 = vld [vmem:[#allocation7 + $0x58] sm:$0xff]
    %v2504 = vld [vmem:[#allocation7 + $0x60] sm:$0xff]
    %v2505 = vld [vmem:[#allocation7 + $0x68] sm:$0xff]
    %v2506 = vld [vmem:[#allocation7 + $0x70] sm:$0xff]
    %v2507 = vld [vmem:[#allocation7 + $0x78] sm:$0xff]
    %v2508 = vld [vmem:[%s11] sm:$0x1]
    %v2510 = vlaneseq
    %v2511 = vshrl.u32 %v2510, 7
    %v2512 = vsub.s32 0, %v2511
    %v2513 = vrot.slane %v2508, %v2512
    %2515 = vmatprep.subr.mxu0 0.0
    %2516 = vmatpush1.msra.mxu0 %v2492
    %2517 = vmatprep.subr.mxu0 0.0
    %2518 = vmatpush1.msra.mxu0 %v2493
    %2519 = vmatprep.subr.mxu0 0.0
    %2520 = vmatpush1.msra.mxu0 %v2494
    %2521 = vmatprep.subr.mxu0 0.0
    %2522 = vmatpush1.msra.mxu0 %v2495
    %2523 = vmatprep.subr.mxu0 0.0
    %2524 = vmatpush1.msra.mxu0 %v2496
    %2525 = vmatprep.subr.mxu0 0.0
    %2526 = vmatpush1.msra.mxu0 %v2497
    %2527 = vmatprep.subr.mxu0 0.0
    %2528 = vmatpush1.msra.mxu0 %v2498
    %2529 = vmatprep.subr.mxu0 0.0
    %2530 = vmatpush1.msra.mxu0 %v2499
    %2531 = vmatprep.subr.mxu0 0.0
    %2532 = vmatpush1.msra.mxu0 %v2500
    %2533 = vmatprep.subr.mxu0 0.0
    %2534 = vmatpush1.msra.mxu0 %v2501
    %2535 = vmatprep.subr.mxu0 0.0
    %2536 = vmatpush1.msra.mxu0 %v2502
    %2537 = vmatprep.subr.mxu0 0.0
    %2538 = vmatpush1.msra.mxu0 %v2503
    %2539 = vmatprep.subr.mxu0 0.0
    %2540 = vmatpush1.msra.mxu0 %v2504
    %2541 = vmatprep.subr.mxu0 0.0
    %2542 = vmatpush1.msra.mxu0 %v2505
    %2543 = vmatprep.subr.mxu0 0.0
    %2544 = vmatpush1.msra.mxu0 %v2506
    %2545 = vmatprep.subr.mxu0 0.0
    %2546 = vmatpush1.msra.mxu0 %v2507
    %2547 = vmatprep.subr.mxu0 0.0
    %2548 = vmatpush1.msra.mxu0 0.0
    %2549 = vmatprep.subr.mxu0 0.0
    %2550 = vmatpush1.msra.mxu0 0.0
    %2551 = vmatprep.subr.mxu0 0.0
    %2552 = vmatpush1.msra.mxu0 0.0
    %2553 = vmatprep.subr.mxu0 0.0
    %2554 = vmatpush1.msra.mxu0 0.0
    %2555 = vmatprep.subr.mxu0 0.0
    %2556 = vmatpush1.msra.mxu0 0.0
    %2557 = vmatprep.subr.mxu0 0.0
    %2558 = vmatpush1.msra.mxu0 0.0
    %2559 = vmatprep.subr.mxu0 0.0
    %2560 = vmatpush1.msra.mxu0 0.0
    %2561 = vmatprep.subr.mxu0 0.0
    %2562 = vmatpush1.msra.mxu0 0.0
    %2563 = vmatprep.subr.mxu0 0.0
    %2564 = vmatpush1.msra.mxu0 0.0
    %2565 = vmatprep.subr.mxu0 0.0
    %2566 = vmatpush1.msra.mxu0 0.0
    %2567 = vmatprep.subr.mxu0 0.0
    %2568 = vmatpush1.msra.mxu0 0.0
    %2569 = vmatprep.subr.mxu0 0.0
    %2570 = vmatpush1.msra.mxu0 0.0
    %2571 = vmatprep.subr.mxu0 0.0
    %2572 = vmatpush1.msra.mxu0 0.0
    %2573 = vmatprep.subr.mxu0 0.0
    %2574 = vmatpush1.msra.mxu0 0.0
    %2575 = vmatprep.subr.mxu0 0.0
    %2576 = vmatpush1.msra.mxu0 0.0
    %2577 = vmatprep.subr.mxu0 0.0
    %2578 = vmatpush1.msra.mxu0 0.0
    %2579 = vmatprep.mubr.f32.mxu0 0.0
    %2580 = vmatmul.mubr.f32.gmra.mrb[0].mxu0 %v2491
    %v2581 = vpop.f32.mrb[0].mxu0
    %v2582 = vadd.f32 %v2513, %v2581
    %v2583 = vpop.f32.mrb[0].mxu0
    %2584 = vdwg.mxu0
    %2585 = vmax.xlane.f32.xlu0 %v2582
    %v2586 = vpop.xlane.xlu0 %2585
    %v2587 = vsub.f32 %v2582, %v2586
    %v2588 = vmul.f32 %v2587, 1.442695
    %v2589 = vpow.pop %v2588
    %2590 = vadd.xlane.f32.xlu0 %v2589
    %v2591 = vpop.xlane.xlu0 %2590
    %v2592 = vrcp.pop %v2591
    %v2593 = vmul.f32 %v2591, %v2592
    %v2594 = vsub.f32 2.0, %v2593
    %v2595 = vmul.f32 %v2592, %v2594
    %v2596 = vmul.f32 %v2589, %v2595
    %2597 = vst [vmem:[%s12] sm:$0xff] %v2596
    // Predicated region
    $region66: #{decoder_gru_forward.1} parent=1 // pred_check
      _
    $region67: #{decoder_gru_forward.1} parent=1 // pred_check_branch
      %2599 = sbr.rel (0) target = $region69
    $region68: #{decoder_gru_forward.1} parent=1 // pred_region
      _
    $region69: #{decoder_gru_forward.1} parent=1 // pred_fallthru
      _
    // Predicated region
    $region70: #{decoder_gru_forward.1} parent=1 // pred_check
      _
    $region71: #{decoder_gru_forward.1} parent=1 // pred_check_branch
      %2601 = sbr.rel (0) target = $region73
    $region72: #{decoder_gru_forward.1} parent=1 // pred_region
      _
    $region73: #{decoder_gru_forward.1} parent=1 // pred_fallthru
      _
    // Predicated region
    $region74: #{decoder_gru_forward.1} parent=1 // pred_check
      _
    $region75: #{decoder_gru_forward.1} parent=1 // pred_check_branch
      %2603 = sbr.rel (0) target = $region77
    $region76: #{decoder_gru_forward.1} parent=1 // pred_region
      _
    $region77: #{decoder_gru_forward.1} parent=1 // pred_fallthru
      _
    // Predicated region
    $region78: #{decoder_gru_forward.1} parent=1 // pred_check
      _
    $region79: #{decoder_gru_forward.1} parent=1 // pred_check_branch
      %2605 = sbr.rel (0) target = $region81
    $region80: #{decoder_gru_forward.1} parent=1 // pred_region
      _
    $region81: #{decoder_gru_forward.1} parent=1 // pred_fallthru
      _
    %2606 = vsyncpa [#allocation3], 1
    %2607 = vsyncpa [#allocation5], 1
    %2608 = vsyncpa [#allocation8], 1

</llo_original>
